<compile_context>
chip_gen: v7x
topology: tpu7x:2x2x1
jax: 0.10.0
libtpu: 0.0.40
codegen_flags: <defaults>
</compile_context>

<pallas_src>
import functools

import jax
import jax.numpy as jnp
from jax.experimental import pallas as pl
from jax.experimental.pallas import tpu as pltpu


# ----------------------------------------------------------------------------
# Pallas kernel: fused AttentionPool2d forward for one batch tile
# ----------------------------------------------------------------------------
def _attn_pool_kernel(x_ref, pos0_ref, pos_sp_ref, wq_ref, bq_ref, wkv_ref,
                      bkv_ref, hmk_ref, hmv_ref, woc_ref, boc_ref,
                      feat_ref, att_ref):
    """Inputs (per grid step):
      x_ref    : (B_TILE, C, HW)  raw NCHW features, spatial dims flattened
      pos0/pos_sp : (1, E)/(HW, E) positional embedding (mean row / spatial)
      wq/bq    : (E, 2E)/(1, 2E)  query proj, head scale folded in, zero V half
      wkv/bkv  : (E, 2E)/(1, 2E)  fused K|V projection (128 output lanes)
      hmk      : (2E, H)          per-head one-hot mask on the K lanes
      hmv      : (H, 2E)          per-head expansion onto the V lanes
      woc/boc  : (2E, Dout)/(1,D) fused out_proj @ c_proj (zero K rows)
    Outputs:
      feat_ref : (B_TILE, 1, Dout)  pooled + projected feature
      att_ref  : (B_TILE, 1, S)     head-averaged attention map (lane-dense)
    """
    b_tile, _, hw = x_ref.shape
    f32 = jnp.float32
    pos0 = pos0_ref[...]
    pos_sp = pos_sp_ref[...]

    # ---- token prep fused in-kernel: transpose + mean token + pos-emb -------
    sp_rows, mean_rows = [], []
    for b in range(b_tile):                        # static unroll, b_tile <= 8
        t_b = jnp.transpose(x_ref[b])              # (HW, E): one XLU transpose
        sp_rows.append(t_b + pos_sp)
        mean_rows.append(jnp.mean(t_b, axis=0, keepdims=True) + pos0)
    sp_tok = sp_rows[0] if b_tile == 1 else jnp.concatenate(sp_rows, axis=0)
    mean_tok = (mean_rows[0] if b_tile == 1
                else jnp.concatenate(mean_rows, axis=0))          # (B_TILE, E)

    # ---- fused K|V projection: one big-M, 128-lane MXU matmul ---------------
    kv_sp = jnp.dot(sp_tok, wkv_ref[...],
                    preferred_element_type=f32) + bkv_ref[...]    # (B*HW, 2E)
    kv_mean = jnp.dot(mean_tok, wkv_ref[...],
                      preferred_element_type=f32) + bkv_ref[...]  # (B, 2E)
    q_pad = jnp.dot(mean_tok, wq_ref[...],
                    preferred_element_type=f32) + bq_ref[...]     # (B, 2E)

    hmk = hmk_ref[...]
    hmv = hmv_ref[...]
    ctx_rows = []
    for b in range(b_tile):                        # small per-batch softmax
        kvb = kv_sp[b * hw:(b + 1) * hw, :]        # (HW, 2E) aligned slice
        kvm = kv_mean[b:b + 1, :]                  # (1, 2E)
        qb = q_pad[b:b + 1, :]                     # (1, 2E) zero on V lanes

        # per-head logits: (q * k) summed within each head via the K-lane mask
        s_sp = jnp.dot(qb * kvb, hmk, preferred_element_type=f32)   # (HW, H)
        s_m = jnp.dot(qb * kvm, hmk, preferred_element_type=f32)    # (1, H)

        # softmax over the S = HW + 1 tokens (mean token handled separately)
        m = jnp.maximum(jnp.max(s_sp, axis=0, keepdims=True), s_m)  # (1, H)
        e_sp = jnp.exp(s_sp - m)
        e_m = jnp.exp(s_m - m)
        inv = 1.0 / (jnp.sum(e_sp, axis=0, keepdims=True) + e_m)    # (1, H)
        p_sp = e_sp * inv                                           # (HW, H)
        p_m = e_m * inv                                             # (1, H)

        # weighted V sum: broadcast head probs back onto the V lanes
        pv_sp = jnp.dot(p_sp, hmv, preferred_element_type=f32)      # (HW, 2E)
        pv_m = jnp.dot(p_m, hmv, preferred_element_type=f32)        # (1, 2E)
        ctx_rows.append(jnp.sum(pv_sp * kvb, axis=0, keepdims=True)
                        + pv_m * kvm)                               # (1, 2E)

        # lane-dense attention-map row: [mean-token prob ; spatial probs]
        att_sp = jnp.mean(jnp.transpose(p_sp), axis=0, keepdims=True)  # (1,HW)
        att_m = jnp.mean(p_m, axis=1, keepdims=True)                   # (1,1)
        att_ref[b] = jnp.concatenate([att_m, att_sp],
                                     axis=1).astype(att_ref.dtype)     # (1,S)

    ctx = ctx_rows[0] if b_tile == 1 else jnp.concatenate(ctx_rows, axis=0)
    final = jnp.dot(ctx, woc_ref[...],
                    preferred_element_type=f32) + boc_ref[...]   # (B, Dout)
    feat_ref[:, 0, :] = final.astype(feat_ref.dtype)


# ----------------------------------------------------------------------------
# Helpers
# ----------------------------------------------------------------------------
def _resident_spec(arr):
    """Whole-array block with constant index_map -> stays resident in VMEM."""
    zeros = (0,) * arr.ndim
    return pl.BlockSpec(arr.shape, lambda n, _z=zeros: _z)


def _torch_squeeze0(a):
    """Mimic torch.Tensor.squeeze(0): drop dim 0 only if its size is 1."""
    return a[0] if a.shape[0] == 1 else a


def _pick_b_tile(n):
    """Largest tile (cap 8) dividing N while keeping >=2 grid steps when
    possible, so v7x's two TensorCores both get work via "parallel"."""
    for cand in (8, 4, 2):
        if n % cand == 0 and n // cand >= 2:
            return cand
    return 1


def _pack_params(params, num_heads):
    """Fold torch-layout weights into the kernel's lane-dense 2E layout."""
    with jax.default_matmul_precision("float32"):
        in_w = params["in_w"].astype(jnp.float32)     # (3E, E) torch in_proj
        in_b = params["in_b"].astype(jnp.float32)     # (3E,)
        E = in_w.shape[1]
        hd = E // num_heads
        scale = float(hd) ** -0.5

        wq = jnp.transpose(in_w[0:E]) * scale          # scale folded into Wq/bq
        bq = in_b[0:E] * scale
        wk = jnp.transpose(in_w[E:2 * E])
        bk = in_b[E:2 * E]
        wv = jnp.transpose(in_w[2 * E:])
        bv = in_b[2 * E:]

        zeros_ee = jnp.zeros((E, E), jnp.float32)
        wq_pad = jnp.concatenate([wq, zeros_ee], axis=1)            # (E, 2E)
        bq_pad = jnp.concatenate([bq, jnp.zeros((E,), jnp.float32)]
                                 ).reshape(1, 2 * E)
        wkv = jnp.concatenate([wk, wv], axis=1)                     # (E, 2E)
        bkv = jnp.concatenate([bk, bv]).reshape(1, 2 * E)

        hm = jnp.repeat(jnp.eye(num_heads, dtype=jnp.float32), hd, axis=0)
        hmk = jnp.concatenate(
            [hm, jnp.zeros((E, num_heads), jnp.float32)], axis=0)   # (2E, H)
        hmv = jnp.concatenate(
            [jnp.zeros((num_heads, E), jnp.float32), jnp.transpose(hm)],
            axis=1)                                                  # (H, 2E)

        # fused out_proj @ c_proj epilogue (ctx lives on the V-lane half)
        wo_t = jnp.transpose(params["out_w"].astype(jnp.float32))   # (E, E)
        wc_t = jnp.transpose(params["c_w"].astype(jnp.float32))     # (E, Dout)
        woc = wo_t @ wc_t                                           # (E, Dout)
        boc = (params["out_b"].astype(jnp.float32) @ wc_t
               + params["c_b"].astype(jnp.float32)).reshape(1, -1)
        woc_pad = jnp.concatenate([jnp.zeros_like(woc), woc], axis=0)

        pos = params["pos"].astype(jnp.float32)
        pos0 = pos[0:1]                                              # (1, E)
        pos_sp = pos[1:]                                             # (HW, E)
    return (pos0, pos_sp, wq_pad, bq_pad, wkv, bkv, hmk, hmv, woc_pad, boc)


# ----------------------------------------------------------------------------
# Wrapper
# ----------------------------------------------------------------------------
@functools.partial(jax.jit, static_argnames=("num_heads", "b_tile"))
def attention_pool2d(x_nchw, params, *, num_heads, b_tile=None):
    """Pallas forward of AttentionPool2d -> (features (N,Dout), attn map)."""
    N, C, H, W = x_nchw.shape
    E = C
    HW = H * W
    S = HW + 1
    Dout = params["c_w"].shape[0]
    assert E % num_heads == 0, "embed_dim must be divisible by num_heads"

    if b_tile is None:
        b_tile = _pick_b_tile(N)
    assert N % b_tile == 0, "b_tile must divide the batch size"
    num_blocks = N // b_tile

    # Free metadata reshape (contiguous); token prep itself happens in-kernel.
    x3 = x_nchw.reshape(N, C, HW).astype(jnp.float32)
    weights = _pack_params(params, num_heads)

    flops_per_batch = (2 * HW * E * (2 * E)          # spatial K|V projection
                       + 2 * 2 * E * (2 * E)         # mean-token K|V and Q
                       + 2 * S * (2 * E) * num_heads  # per-head logits
                       + 2 * S * num_heads * (2 * E)  # prob -> V-lane bcast
                       + 2 * (2 * E) * Dout)          # fused epilogue
    bytes_accessed = 4 * (int(x3.size)
                          + sum(int(w.size) for w in weights)
                          + N * (Dout + S))
    cost = pl.CostEstimate(flops=int(N * flops_per_batch),
                           transcendentals=int(N * S * num_heads),
                           bytes_accessed=int(bytes_accessed))

    feat3, att = pl.pallas_call(
        _attn_pool_kernel,
        grid=(num_blocks,),
        in_specs=[pl.BlockSpec((b_tile, C, HW), lambda n: (n, 0, 0))]
                 + [_resident_spec(w) for w in weights],
        out_specs=[pl.BlockSpec((b_tile, 1, Dout), lambda n: (n, 0, 0)),
                   pl.BlockSpec((b_tile, 1, S), lambda n: (n, 0, 0))],
        out_shape=(jax.ShapeDtypeStruct((N, 1, Dout), jnp.float32),
                   jax.ShapeDtypeStruct((N, 1, S), jnp.float32)),
        compiler_params=pltpu.CompilerParams(
            dimension_semantics=("parallel",),       # megacore over batch tiles
            vmem_limit_bytes=32 * 1024 * 1024),      # safe on v5e/v6e/v7x
        cost_estimate=cost,
    )(x3, *weights)

    feat = feat3.reshape(N, Dout)          # == torch x.squeeze(0)
    return feat, _torch_squeeze0(att)      # att: (N, 1, S) like PyTorch MHA


# ----------------------------------------------------------------------------
# Deterministic synthetic parameters (torch layouts)
# ----------------------------------------------------------------------------
def init_attention_pool_params(key, spacial_dim, embed_dim, num_heads,
                               output_dim=None):
    out_dim = output_dim or embed_dim
    S = spacial_dim ** 2 + 1
    E = embed_dim
    ks = jax.random.split(key, 7)
    return {
        "pos": jax.random.normal(ks[0], (S, E), jnp.float32) / E ** 0.5,
        "in_w": 0.1 * jax.random.normal(ks[1], (3 * E, E), jnp.float32),
        "in_b": 0.05 * jax.random.normal(ks[2], (3 * E,), jnp.float32),
        "out_w": 0.1 * jax.random.normal(ks[3], (E, E), jnp.float32),
        "out_b": 0.05 * jax.random.normal(ks[4], (E,), jnp.float32),
        "c_w": 0.1 * jax.random.normal(ks[5], (out_dim, E), jnp.float32),
        "c_b": 0.05 * jax.random.normal(ks[6], (out_dim,), jnp.float32),
    }


# ----------------------------------------------------------------------------
# Pure-JAX reference (mirrors PyTorch AttentionPool2d.forward)
# ----------------------------------------------------------------------------
def attention_pool2d_ref(x_nchw, params, num_heads):
    with jax.default_matmul_precision("float32"):
        N, C, H, W = x_nchw.shape
        E = C
        hd = E // num_heads
        seq = jnp.transpose(x_nchw.reshape(N, C, H * W), (2, 0, 1))   # (HW,N,E)
        seq = jnp.concatenate([jnp.mean(seq, axis=0, keepdims=True), seq],
                              axis=0)
        seq = seq + params["pos"][:, None, :]                          # (S,N,E)
        S = seq.shape[0]

        wq = jnp.transpose(params["in_w"][0:E])
        wk = jnp.transpose(params["in_w"][E:2 * E])
        wv = jnp.transpose(params["in_w"][2 * E:])
        bq, bk, bv = (params["in_b"][0:E], params["in_b"][E:2 * E],
                      params["in_b"][2 * E:])

        q = (seq[:1] @ wq + bq) * hd ** -0.5                           # (1,N,E)
        k = seq @ wk + bk
        v = seq @ wv + bv
        qh = q.reshape(1, N, num_heads, hd)
        kh = k.reshape(S, N, num_heads, hd)
        vh = v.reshape(S, N, num_heads, hd)
        logits = jnp.einsum("lnhd,snhd->nhls", qh, kh)
        p = jax.nn.softmax(logits, axis=-1)
        ctx = jnp.einsum("nhls,snhd->lnhd", p, vh).reshape(1, N, E)
        out = ctx @ jnp.transpose(params["out_w"]) + params["out_b"]
        final = out @ jnp.transpose(params["c_w"]) + params["c_b"]
        att = jnp.mean(p, axis=1)                                      # (N,1,S)
        return final[0], _torch_squeeze0(att)


# ----------------------------------------------------------------------------
if __name__ == "__main__":
    key = jax.random.PRNGKey(0)
    pkey, xkey = jax.random.split(key)

    batch, embed_dim, spacial_dim = 4, 64, 8
    num_heads, output_dim = 4, 128
    S = spacial_dim ** 2 + 1

    params = init_attention_pool_params(pkey, spacial_dim, embed_dim,
                                        num_heads, output_dim)
    x = jax.random.normal(xkey, (batch, embed_dim, spacial_dim, spacial_dim),
                          jnp.float32)                                  # NCHW

    feat, att = attention_pool2d(x, params, num_heads=num_heads)
    jax.block_until_ready(feat)
    jax.block_until_ready(att)

    assert feat.shape == (batch, output_dim), feat.shape
    assert att.shape == (batch, 1, S), att.shape
    assert bool(jnp.all(jnp.isfinite(feat)))
    assert bool(jnp.all(jnp.isfinite(att)))
    # head-averaged attention rows are softmax distributions -> sum to 1
    assert bool(jnp.allclose(att.sum(axis=-1), 1.0, atol=1e-4))

    # pure-JAX reference check (all-f32 path -> tight tolerances)
    feat_r, att_r = attention_pool2d_ref(x, params, num_heads)
    assert bool(jnp.allclose(feat, feat_r, atol=1e-4, rtol=1e-4)), \
        float(jnp.max(jnp.abs(feat - feat_r)))
    assert bool(jnp.allclose(att, att_r, atol=1e-5, rtol=1e-5)), \
        float(jnp.max(jnp.abs(att - att_r)))

    print("KERNEL_OK")
</pallas_src>

<mosaic_0001>
module attributes {stable_mosaic.version = 11 : i64} {
  func.func @_attn_pool_kernel(%arg0: i32, %arg1: memref<2x64x64xf32, #tpu.memory_space<vmem>>, %arg2: memref<1x64xf32, #tpu.memory_space<vmem>>, %arg3: memref<64x64xf32, #tpu.memory_space<vmem>>, %arg4: memref<64x128xf32, #tpu.memory_space<vmem>>, %arg5: memref<1x128xf32, #tpu.memory_space<vmem>>, %arg6: memref<64x128xf32, #tpu.memory_space<vmem>>, %arg7: memref<1x128xf32, #tpu.memory_space<vmem>>, %arg8: memref<128x4xf32, #tpu.memory_space<vmem>>, %arg9: memref<4x128xf32, #tpu.memory_space<vmem>>, %arg10: memref<128x128xf32, #tpu.memory_space<vmem>>, %arg11: memref<1x128xf32, #tpu.memory_space<vmem>>, %arg12: memref<2x1x128xf32, #tpu.memory_space<vmem>>, %arg13: memref<2x1x65xf32, #tpu.memory_space<vmem>>) attributes {dimension_semantics = [#tpu.dimension_semantics<parallel>], iteration_bounds = array<i64: 2>, scalar_prefetch = 0 : i64, scratch_operands = 0 : i64, tpu.core_type = #tpu.core_type<tc>, window_params = [{transform_indices = @transform_0, window_bounds = array<i64: 2, 64, 64>}, {pipeline_mode = #tpu.pipeline_mode<synchronous>, transform_indices = @transform_1, window_bounds = array<i64: 1, 64>}, {pipeline_mode = #tpu.pipeline_mode<synchronous>, transform_indices = @transform_2, window_bounds = array<i64: 64, 64>}, {pipeline_mode = #tpu.pipeline_mode<synchronous>, transform_indices = @transform_3, window_bounds = array<i64: 64, 128>}, {pipeline_mode = #tpu.pipeline_mode<synchronous>, transform_indices = @transform_4, window_bounds = array<i64: 1, 128>}, {pipeline_mode = #tpu.pipeline_mode<synchronous>, transform_indices = @transform_5, window_bounds = array<i64: 64, 128>}, {pipeline_mode = #tpu.pipeline_mode<synchronous>, transform_indices = @transform_6, window_bounds = array<i64: 1, 128>}, {pipeline_mode = #tpu.pipeline_mode<synchronous>, transform_indices = @transform_7, window_bounds = array<i64: 128, 4>}, {pipeline_mode = #tpu.pipeline_mode<synchronous>, transform_indices = @transform_8, window_bounds = array<i64: 4, 128>}, {pipeline_mode = #tpu.pipeline_mode<synchronous>, transform_indices = @transform_9, window_bounds = array<i64: 128, 128>}, {pipeline_mode = #tpu.pipeline_mode<synchronous>, transform_indices = @transform_10, window_bounds = array<i64: 1, 128>}, {transform_indices = @transform_11, window_bounds = array<i64: 2, 1, 128>}, {transform_indices = @transform_12, window_bounds = array<i64: 2, 1, 65>}]} {
    %c0 = arith.constant 0 : index
    %c0_0 = arith.constant 0 : index
    %0 = vector.load %arg2[%c0, %c0_0] : memref<1x64xf32, #tpu.memory_space<vmem>>, vector<1x64xf32>
    %c0_1 = arith.constant 0 : index
    %c0_2 = arith.constant 0 : index
    %1 = vector.load %arg3[%c0_1, %c0_2] : memref<64x64xf32, #tpu.memory_space<vmem>>, vector<64x64xf32>
    %c0_3 = arith.constant 0 : index
    %c0_4 = arith.constant 0 : index
    %c0_5 = arith.constant 0 : index
    %2 = vector.load %arg1[%c0_3, %c0_4, %c0_5] : memref<2x64x64xf32, #tpu.memory_space<vmem>>, vector<1x64x64xf32>
    %3 = vector.shape_cast %2 : vector<1x64x64xf32> to vector<64x64xf32>
    %4 = tpu.transpose %3, [1, 0] : vector<64x64xf32> -> vector<64x64xf32>
    %5 = arith.addf %4, %1 : vector<64x64xf32>
    %cst = arith.constant dense<0.000000e+00> : vector<64xf32>
    %6 = vector.multi_reduction <add>, %4, %cst [0] : vector<64x64xf32> to vector<64xf32>
    %7 = vector.shape_cast %6 : vector<64xf32> to vector<1x64xf32>
    %cst_6 = arith.constant 6.400000e+01 : f32
    %8 = vector.broadcast %cst_6 : f32 to vector<1x64xf32>
    %9 = arith.divf %7, %8 : vector<1x64xf32>
    %10 = arith.addf %9, %0 : vector<1x64xf32>
    %c1 = arith.constant 1 : index
    %c0_7 = arith.constant 0 : index
    %c0_8 = arith.constant 0 : index
    %11 = vector.load %arg1[%c1, %c0_7, %c0_8] : memref<2x64x64xf32, #tpu.memory_space<vmem>>, vector<1x64x64xf32>
    %12 = vector.shape_cast %11 : vector<1x64x64xf32> to vector<64x64xf32>
    %13 = tpu.transpose %12, [1, 0] : vector<64x64xf32> -> vector<64x64xf32>
    %14 = arith.addf %13, %1 : vector<64x64xf32>
    %cst_9 = arith.constant dense<0.000000e+00> : vector<64xf32>
    %15 = vector.multi_reduction <add>, %13, %cst_9 [0] : vector<64x64xf32> to vector<64xf32>
    %16 = vector.shape_cast %15 : vector<64xf32> to vector<1x64xf32>
    %cst_10 = arith.constant 6.400000e+01 : f32
    %17 = vector.broadcast %cst_10 : f32 to vector<1x64xf32>
    %18 = arith.divf %16, %17 : vector<1x64xf32>
    %19 = arith.addf %18, %0 : vector<1x64xf32>
    %20 = tpu.concatenate %5, %14 in 0 : vector<64x64xf32>, vector<64x64xf32> -> vector<128x64xf32>
    %21 = tpu.concatenate %10, %19 in 0 : vector<1x64xf32>, vector<1x64xf32> -> vector<2x64xf32>
    %c0_11 = arith.constant 0 : index
    %c0_12 = arith.constant 0 : index
    %22 = vector.load %arg6[%c0_11, %c0_12] : memref<64x128xf32, #tpu.memory_space<vmem>>, vector<64x128xf32>
    %cst_13 = arith.constant dense<0.000000e+00> : vector<128x128xf32>
    %23 = tpu.matmul %20, %22, %cst_13 {dimension_numbers = #tpu.dot_dimension_numbers<[1], [0], [0], [1], [0, 0, 1, 1], [], []>} : vector<128x64xf32>, vector<64x128xf32>, vector<128x128xf32> -> vector<128x128xf32>
    %c0_14 = arith.constant 0 : index
    %c0_15 = arith.constant 0 : index
    %24 = vector.load %arg7[%c0_14, %c0_15] : memref<1x128xf32, #tpu.memory_space<vmem>>, vector<1x128xf32>
    %25 = vector.broadcast %24 : vector<1x128xf32> to vector<128x128xf32>
    %26 = arith.addf %23, %25 : vector<128x128xf32>
    %c0_16 = arith.constant 0 : index
    %c0_17 = arith.constant 0 : index
    %27 = vector.load %arg6[%c0_16, %c0_17] : memref<64x128xf32, #tpu.memory_space<vmem>>, vector<64x128xf32>
    %cst_18 = arith.constant dense<0.000000e+00> : vector<2x128xf32>
    %28 = tpu.matmul %21, %27, %cst_18 {dimension_numbers = #tpu.dot_dimension_numbers<[1], [0], [0], [1], [0, 0, 1, 1], [], []>} : vector<2x64xf32>, vector<64x128xf32>, vector<2x128xf32> -> vector<2x128xf32>
    %c0_19 = arith.constant 0 : index
    %c0_20 = arith.constant 0 : index
    %29 = vector.load %arg7[%c0_19, %c0_20] : memref<1x128xf32, #tpu.memory_space<vmem>>, vector<1x128xf32>
    %30 = vector.broadcast %29 : vector<1x128xf32> to vector<2x128xf32>
    %31 = arith.addf %28, %30 : vector<2x128xf32>
    %c0_21 = arith.constant 0 : index
    %c0_22 = arith.constant 0 : index
    %32 = vector.load %arg4[%c0_21, %c0_22] : memref<64x128xf32, #tpu.memory_space<vmem>>, vector<64x128xf32>
    %cst_23 = arith.constant dense<0.000000e+00> : vector<2x128xf32>
    %33 = tpu.matmul %21, %32, %cst_23 {dimension_numbers = #tpu.dot_dimension_numbers<[1], [0], [0], [1], [0, 0, 1, 1], [], []>} : vector<2x64xf32>, vector<64x128xf32>, vector<2x128xf32> -> vector<2x128xf32>
    %c0_24 = arith.constant 0 : index
    %c0_25 = arith.constant 0 : index
    %34 = vector.load %arg5[%c0_24, %c0_25] : memref<1x128xf32, #tpu.memory_space<vmem>>, vector<1x128xf32>
    %35 = vector.broadcast %34 : vector<1x128xf32> to vector<2x128xf32>
    %36 = arith.addf %33, %35 : vector<2x128xf32>
    %c0_26 = arith.constant 0 : index
    %c0_27 = arith.constant 0 : index
    %37 = vector.load %arg8[%c0_26, %c0_27] : memref<128x4xf32, #tpu.memory_space<vmem>>, vector<128x4xf32>
    %c0_28 = arith.constant 0 : index
    %c0_29 = arith.constant 0 : index
    %38 = vector.load %arg9[%c0_28, %c0_29] : memref<4x128xf32, #tpu.memory_space<vmem>>, vector<4x128xf32>
    %39 = vector.extract_strided_slice %26 {offsets = [0, 0], sizes = [64, 128], strides = [1, 1]} : vector<128x128xf32> to vector<64x128xf32>
    %40 = vector.extract_strided_slice %31 {offsets = [0, 0], sizes = [1, 128], strides = [1, 1]} : vector<2x128xf32> to vector<1x128xf32>
    %41 = vector.extract_strided_slice %36 {offsets = [0, 0], sizes = [1, 128], strides = [1, 1]} : vector<2x128xf32> to vector<1x128xf32>
    %42 = vector.broadcast %41 : vector<1x128xf32> to vector<64x128xf32>
    %43 = arith.mulf %42, %39 : vector<64x128xf32>
    %cst_30 = arith.constant dense<0.000000e+00> : vector<64x4xf32>
    %44 = tpu.matmul %43, %37, %cst_30 {dimension_numbers = #tpu.dot_dimension_numbers<[1], [0], [0], [1], [0, 0, 1, 1], [], []>} : vector<64x128xf32>, vector<128x4xf32>, vector<64x4xf32> -> vector<64x4xf32>
    %45 = arith.mulf %41, %40 : vector<1x128xf32>
    %cst_31 = arith.constant dense<0.000000e+00> : vector<1x4xf32>
    %46 = tpu.matmul %45, %37, %cst_31 {dimension_numbers = #tpu.dot_dimension_numbers<[1], [0], [0], [1], [0, 0, 1, 1], [], []>} : vector<1x128xf32>, vector<128x4xf32>, vector<1x4xf32> -> vector<1x4xf32>
    %cst_32 = arith.constant dense<0xFF800000> : vector<4xf32>
    %47 = vector.multi_reduction <maximumf>, %44, %cst_32 [0] : vector<64x4xf32> to vector<4xf32>
    %48 = vector.shape_cast %47 : vector<4xf32> to vector<1x4xf32>
    %49 = arith.maximumf %48, %46 : vector<1x4xf32>
    %50 = vector.broadcast %49 : vector<1x4xf32> to vector<64x4xf32>
    %51 = arith.subf %44, %50 : vector<64x4xf32>
    %52 = math.exp %51 : vector<64x4xf32>
    %53 = arith.subf %46, %49 : vector<1x4xf32>
    %54 = math.exp %53 : vector<1x4xf32>
    %cst_33 = arith.constant dense<0.000000e+00> : vector<4xf32>
    %55 = vector.multi_reduction <add>, %52, %cst_33 [0] : vector<64x4xf32> to vector<4xf32>
    %56 = vector.shape_cast %55 : vector<4xf32> to vector<1x4xf32>
    %57 = arith.addf %56, %54 : vector<1x4xf32>
    %cst_34 = arith.constant 1.000000e+00 : f32
    %58 = vector.broadcast %cst_34 : f32 to vector<1x4xf32>
    %59 = arith.divf %58, %57 : vector<1x4xf32>
    %60 = vector.broadcast %59 : vector<1x4xf32> to vector<64x4xf32>
    %61 = arith.mulf %52, %60 : vector<64x4xf32>
    %62 = arith.mulf %54, %59 : vector<1x4xf32>
    %cst_35 = arith.constant dense<0.000000e+00> : vector<64x128xf32>
    %63 = tpu.matmul %61, %38, %cst_35 {dimension_numbers = #tpu.dot_dimension_numbers<[1], [0], [0], [1], [0, 0, 1, 1], [], []>} : vector<64x4xf32>, vector<4x128xf32>, vector<64x128xf32> -> vector<64x128xf32>
    %cst_36 = arith.constant dense<0.000000e+00> : vector<1x128xf32>
    %64 = tpu.matmul %62, %38, %cst_36 {dimension_numbers = #tpu.dot_dimension_numbers<[1], [0], [0], [1], [0, 0, 1, 1], [], []>} : vector<1x4xf32>, vector<4x128xf32>, vector<1x128xf32> -> vector<1x128xf32>
    %65 = arith.mulf %63, %39 : vector<64x128xf32>
    %cst_37 = arith.constant dense<0.000000e+00> : vector<128xf32>
    %66 = vector.multi_reduction <add>, %65, %cst_37 [0] : vector<64x128xf32> to vector<128xf32>
    %67 = vector.shape_cast %66 : vector<128xf32> to vector<1x128xf32>
    %68 = arith.mulf %64, %40 : vector<1x128xf32>
    %69 = arith.addf %67, %68 : vector<1x128xf32>
    %70 = tpu.transpose %61, [1, 0] : vector<64x4xf32> -> vector<4x64xf32>
    %cst_38 = arith.constant dense<0.000000e+00> : vector<64xf32>
    %71 = vector.multi_reduction <add>, %70, %cst_38 [0] : vector<4x64xf32> to vector<64xf32>
    %72 = vector.shape_cast %71 : vector<64xf32> to vector<1x64xf32>
    %cst_39 = arith.constant 4.000000e+00 : f32
    %73 = vector.broadcast %cst_39 : f32 to vector<1x64xf32>
    %74 = arith.divf %72, %73 : vector<1x64xf32>
    %cst_40 = arith.constant dense<0.000000e+00> : vector<1xf32>
    %75 = vector.multi_reduction <add>, %62, %cst_40 [1] : vector<1x4xf32> to vector<1xf32>
    %76 = vector.shape_cast %75 : vector<1xf32> to vector<1x1xf32>
    %cst_41 = arith.constant 4.000000e+00 : f32
    %77 = vector.broadcast %cst_41 : f32 to vector<1x1xf32>
    %78 = arith.divf %76, %77 : vector<1x1xf32>
    %79 = tpu.concatenate %78, %74 in 1 : vector<1x1xf32>, vector<1x64xf32> -> vector<1x65xf32>
    %c0_42 = arith.constant 0 : index
    %c0_43 = arith.constant 0 : index
    %c0_44 = arith.constant 0 : index
    %80 = vector.load %arg13[%c0_42, %c0_43, %c0_44] : memref<2x1x65xf32, #tpu.memory_space<vmem>>, vector<1x1x65xf32>
    %81 = vector.shape_cast %80 : vector<1x1x65xf32> to vector<1x65xf32>
    %82 = vector.shape_cast %79 : vector<1x65xf32> to vector<1x1x65xf32>
    tpu.vector_store %arg13[%c0_42, %c0_43, %c0_44], %82 {strides = array<i32>} : memref<2x1x65xf32, #tpu.memory_space<vmem>>, vector<1x1x65xf32>,
    %83 = vector.extract_strided_slice %26 {offsets = [64, 0], sizes = [64, 128], strides = [1, 1]} : vector<128x128xf32> to vector<64x128xf32>
    %84 = vector.extract_strided_slice %31 {offsets = [1, 0], sizes = [1, 128], strides = [1, 1]} : vector<2x128xf32> to vector<1x128xf32>
    %85 = vector.extract_strided_slice %36 {offsets = [1, 0], sizes = [1, 128], strides = [1, 1]} : vector<2x128xf32> to vector<1x128xf32>
    %86 = vector.broadcast %85 : vector<1x128xf32> to vector<64x128xf32>
    %87 = arith.mulf %86, %83 : vector<64x128xf32>
    %cst_45 = arith.constant dense<0.000000e+00> : vector<64x4xf32>
    %88 = tpu.matmul %87, %37, %cst_45 {dimension_numbers = #tpu.dot_dimension_numbers<[1], [0], [0], [1], [0, 0, 1, 1], [], []>} : vector<64x128xf32>, vector<128x4xf32>, vector<64x4xf32> -> vector<64x4xf32>
    %89 = arith.mulf %85, %84 : vector<1x128xf32>
    %cst_46 = arith.constant dense<0.000000e+00> : vector<1x4xf32>
    %90 = tpu.matmul %89, %37, %cst_46 {dimension_numbers = #tpu.dot_dimension_numbers<[1], [0], [0], [1], [0, 0, 1, 1], [], []>} : vector<1x128xf32>, vector<128x4xf32>, vector<1x4xf32> -> vector<1x4xf32>
    %cst_47 = arith.constant dense<0xFF800000> : vector<4xf32>
    %91 = vector.multi_reduction <maximumf>, %88, %cst_47 [0] : vector<64x4xf32> to vector<4xf32>
    %92 = vector.shape_cast %91 : vector<4xf32> to vector<1x4xf32>
    %93 = arith.maximumf %92, %90 : vector<1x4xf32>
    %94 = vector.broadcast %93 : vector<1x4xf32> to vector<64x4xf32>
    %95 = arith.subf %88, %94 : vector<64x4xf32>
    %96 = math.exp %95 : vector<64x4xf32>
    %97 = arith.subf %90, %93 : vector<1x4xf32>
    %98 = math.exp %97 : vector<1x4xf32>
    %cst_48 = arith.constant dense<0.000000e+00> : vector<4xf32>
    %99 = vector.multi_reduction <add>, %96, %cst_48 [0] : vector<64x4xf32> to vector<4xf32>
    %100 = vector.shape_cast %99 : vector<4xf32> to vector<1x4xf32>
    %101 = arith.addf %100, %98 : vector<1x4xf32>
    %cst_49 = arith.constant 1.000000e+00 : f32
    %102 = vector.broadcast %cst_49 : f32 to vector<1x4xf32>
    %103 = arith.divf %102, %101 : vector<1x4xf32>
    %104 = vector.broadcast %103 : vector<1x4xf32> to vector<64x4xf32>
    %105 = arith.mulf %96, %104 : vector<64x4xf32>
    %106 = arith.mulf %98, %103 : vector<1x4xf32>
    %cst_50 = arith.constant dense<0.000000e+00> : vector<64x128xf32>
    %107 = tpu.matmul %105, %38, %cst_50 {dimension_numbers = #tpu.dot_dimension_numbers<[1], [0], [0], [1], [0, 0, 1, 1], [], []>} : vector<64x4xf32>, vector<4x128xf32>, vector<64x128xf32> -> vector<64x128xf32>
    %cst_51 = arith.constant dense<0.000000e+00> : vector<1x128xf32>
    %108 = tpu.matmul %106, %38, %cst_51 {dimension_numbers = #tpu.dot_dimension_numbers<[1], [0], [0], [1], [0, 0, 1, 1], [], []>} : vector<1x4xf32>, vector<4x128xf32>, vector<1x128xf32> -> vector<1x128xf32>
    %109 = arith.mulf %107, %83 : vector<64x128xf32>
    %cst_52 = arith.constant dense<0.000000e+00> : vector<128xf32>
    %110 = vector.multi_reduction <add>, %109, %cst_52 [0] : vector<64x128xf32> to vector<128xf32>
    %111 = vector.shape_cast %110 : vector<128xf32> to vector<1x128xf32>
    %112 = arith.mulf %108, %84 : vector<1x128xf32>
    %113 = arith.addf %111, %112 : vector<1x128xf32>
    %114 = tpu.transpose %105, [1, 0] : vector<64x4xf32> -> vector<4x64xf32>
    %cst_53 = arith.constant dense<0.000000e+00> : vector<64xf32>
    %115 = vector.multi_reduction <add>, %114, %cst_53 [0] : vector<4x64xf32> to vector<64xf32>
    %116 = vector.shape_cast %115 : vector<64xf32> to vector<1x64xf32>
    %cst_54 = arith.constant 4.000000e+00 : f32
    %117 = vector.broadcast %cst_54 : f32 to vector<1x64xf32>
    %118 = arith.divf %116, %117 : vector<1x64xf32>
    %cst_55 = arith.constant dense<0.000000e+00> : vector<1xf32>
    %119 = vector.multi_reduction <add>, %106, %cst_55 [1] : vector<1x4xf32> to vector<1xf32>
    %120 = vector.shape_cast %119 : vector<1xf32> to vector<1x1xf32>
    %cst_56 = arith.constant 4.000000e+00 : f32
    %121 = vector.broadcast %cst_56 : f32 to vector<1x1xf32>
    %122 = arith.divf %120, %121 : vector<1x1xf32>
    %123 = tpu.concatenate %122, %118 in 1 : vector<1x1xf32>, vector<1x64xf32> -> vector<1x65xf32>
    %c1_57 = arith.constant 1 : index
    %c0_58 = arith.constant 0 : index
    %c0_59 = arith.constant 0 : index
    %124 = vector.load %arg13[%c1_57, %c0_58, %c0_59] : memref<2x1x65xf32, #tpu.memory_space<vmem>>, vector<1x1x65xf32>
    %125 = vector.shape_cast %124 : vector<1x1x65xf32> to vector<1x65xf32>
    %126 = vector.shape_cast %123 : vector<1x65xf32> to vector<1x1x65xf32>
    tpu.vector_store %arg13[%c1_57, %c0_58, %c0_59], %126 {strides = array<i32>} : memref<2x1x65xf32, #tpu.memory_space<vmem>>, vector<1x1x65xf32>,
    %127 = tpu.concatenate %69, %113 in 0 : vector<1x128xf32>, vector<1x128xf32> -> vector<2x128xf32>
    %c0_60 = arith.constant 0 : index
    %c0_61 = arith.constant 0 : index
    %128 = vector.load %arg10[%c0_60, %c0_61] : memref<128x128xf32, #tpu.memory_space<vmem>>, vector<128x128xf32>
    %cst_62 = arith.constant dense<0.000000e+00> : vector<2x128xf32>
    %129 = tpu.matmul %127, %128, %cst_62 {dimension_numbers = #tpu.dot_dimension_numbers<[1], [0], [0], [1], [0, 0, 1, 1], [], []>} : vector<2x128xf32>, vector<128x128xf32>, vector<2x128xf32> -> vector<2x128xf32>
    %c0_63 = arith.constant 0 : index
    %c0_64 = arith.constant 0 : index
    %130 = vector.load %arg11[%c0_63, %c0_64] : memref<1x128xf32, #tpu.memory_space<vmem>>, vector<1x128xf32>
    %131 = vector.broadcast %130 : vector<1x128xf32> to vector<2x128xf32>
    %132 = arith.addf %129, %131 : vector<2x128xf32>
    %c0_65 = arith.constant 0 : index
    %c0_66 = arith.constant 0 : index
    %c0_67 = arith.constant 0 : index
    %133 = vector.load %arg12[%c0_65, %c0_66, %c0_67] : memref<2x1x128xf32, #tpu.memory_space<vmem>>, vector<2x1x128xf32>
    %134 = vector.shape_cast %133 : vector<2x1x128xf32> to vector<2x128xf32>
    %135 = vector.shape_cast %132 : vector<2x128xf32> to vector<2x1x128xf32>
    tpu.vector_store %arg12[%c0_65, %c0_66, %c0_67], %135 {strides = array<i32>} : memref<2x1x128xf32, #tpu.memory_space<vmem>>, vector<2x1x128xf32>,
    return
  }
  func.func @transform_0(%arg0: i32) -> (i32, i32, i32) {
    %c0_i32 = arith.constant 0 : i32
    %c0_i32_0 = arith.constant 0 : i32
    %c0_i32_1 = arith.constant 0 : i32
    return %arg0, %c0_i32, %c0_i32_0 : i32, i32, i32
  }
  func.func @transform_1(%arg0: i32) -> (i32, i32) {
    %c0_i32 = arith.constant 0 : i32
    %c0_i32_0 = arith.constant 0 : i32
    %c0_i32_1 = arith.constant 0 : i32
    return %c0_i32, %c0_i32_0 : i32, i32
  }
  func.func @transform_2(%arg0: i32) -> (i32, i32) {
    %c0_i32 = arith.constant 0 : i32
    %c0_i32_0 = arith.constant 0 : i32
    %c0_i32_1 = arith.constant 0 : i32
    return %c0_i32, %c0_i32_0 : i32, i32
  }
  func.func @transform_3(%arg0: i32) -> (i32, i32) {
    %c0_i32 = arith.constant 0 : i32
    %c0_i32_0 = arith.constant 0 : i32
    %c0_i32_1 = arith.constant 0 : i32
    return %c0_i32, %c0_i32_0 : i32, i32
  }
  func.func @transform_4(%arg0: i32) -> (i32, i32) {
    %c0_i32 = arith.constant 0 : i32
    %c0_i32_0 = arith.constant 0 : i32
    %c0_i32_1 = arith.constant 0 : i32
    return %c0_i32, %c0_i32_0 : i32, i32
  }
  func.func @transform_5(%arg0: i32) -> (i32, i32) {
    %c0_i32 = arith.constant 0 : i32
    %c0_i32_0 = arith.constant 0 : i32
    %c0_i32_1 = arith.constant 0 : i32
    return %c0_i32, %c0_i32_0 : i32, i32
  }
  func.func @transform_6(%arg0: i32) -> (i32, i32) {
    %c0_i32 = arith.constant 0 : i32
    %c0_i32_0 = arith.constant 0 : i32
    %c0_i32_1 = arith.constant 0 : i32
    return %c0_i32, %c0_i32_0 : i32, i32
  }
  func.func @transform_7(%arg0: i32) -> (i32, i32) {
    %c0_i32 = arith.constant 0 : i32
    %c0_i32_0 = arith.constant 0 : i32
    %c0_i32_1 = arith.constant 0 : i32
    return %c0_i32, %c0_i32_0 : i32, i32
  }
  func.func @transform_8(%arg0: i32) -> (i32, i32) {
    %c0_i32 = arith.constant 0 : i32
    %c0_i32_0 = arith.constant 0 : i32
    %c0_i32_1 = arith.constant 0 : i32
    return %c0_i32, %c0_i32_0 : i32, i32
  }
  func.func @transform_9(%arg0: i32) -> (i32, i32) {
    %c0_i32 = arith.constant 0 : i32
    %c0_i32_0 = arith.constant 0 : i32
    %c0_i32_1 = arith.constant 0 : i32
    return %c0_i32, %c0_i32_0 : i32, i32
  }
  func.func @transform_10(%arg0: i32) -> (i32, i32) {
    %c0_i32 = arith.constant 0 : i32
    %c0_i32_0 = arith.constant 0 : i32
    %c0_i32_1 = arith.constant 0 : i32
    return %c0_i32, %c0_i32_0 : i32, i32
  }
  func.func @transform_11(%arg0: i32) -> (i32, i32, i32) {
    %c0_i32 = arith.constant 0 : i32
    %c0_i32_0 = arith.constant 0 : i32
    %c0_i32_1 = arith.constant 0 : i32
    return %arg0, %c0_i32, %c0_i32_0 : i32, i32, i32
  }
  func.func @transform_12(%arg0: i32) -> (i32, i32, i32) {
    %c0_i32 = arith.constant 0 : i32
    %c0_i32_0 = arith.constant 0 : i32
    %c0_i32_1 = arith.constant 0 : i32
    return %arg0, %c0_i32, %c0_i32_0 : i32, i32, i32
  }
}

</mosaic_0001>

<llo_original>
// kernel: attention_pool2d.1
$region0: #{attention_pool2d.1}
  #allocation0 [shape = 'u32[]', space=smem, size = 0x4, offset = 0x4, fixed_abs, tag = 'smem constant byte address 0x4 - core index']
  #allocation1 [shape = 'u32[144,128]{1,0:T(1,128)}', space=vmem, size = 0x12000, scoped, tag = 'internal scratch']
  %s0 = inlined_call_operand.vmem [shape: f32[4,64,64], index: 0, kind: input, shape index: {}]
  %s1 = inlined_call_operand.vmem [shape: f32[1,64], index: 1, kind: input, shape index: {}]
  %s2 = inlined_call_operand.vmem [shape: f32[64,64], index: 2, kind: input, shape index: {}]
  %s3 = inlined_call_operand.vmem [shape: f32[64,128], index: 3, kind: input, shape index: {}]
  %s4 = inlined_call_operand.vmem [shape: f32[1,128], index: 4, kind: input, shape index: {}]
  %s5 = inlined_call_operand.vmem [shape: f32[64,128], index: 5, kind: input, shape index: {}]
  %s6 = inlined_call_operand.vmem [shape: f32[1,128], index: 6, kind: input, shape index: {}]
  %s7 = inlined_call_operand.vmem [shape: f32[128,4], index: 7, kind: input, shape index: {}]
  %s8 = inlined_call_operand.vmem [shape: f32[4,128], index: 8, kind: input, shape index: {}]
  %s9 = inlined_call_operand.vmem [shape: f32[128,128], index: 9, kind: input, shape index: {}]
  %s10 = inlined_call_operand.vmem [shape: f32[1,128], index: 10, kind: input, shape index: {}]
  %s11 = inlined_call_operand.hbm [shape: f32[4,1,128], index: 11, kind: output, shape index: {0}]
  %s12 = inlined_call_operand.hbm [shape: f32[4,1,65], index: 12, kind: output, shape index: {1}]
  %13 = xla_tuple %s11, %s12
  %s14 = sld [smem:[#allocation0]]
  $region85: #{attention_pool2d.1} parent=0
    _
  %s16 = ssub.s32 1, %s14
  %s17 = scalar_select 0, %s16, %s14
  $region1: #{attention_pool2d.1} parent=0
    #allocation2 [shape = 'u8[2048]{0}', space=vmem, size = 0x800, scoped, tag = 'output window, operand 0']
    #allocation3 [shape = 's32[2]{0}', space=sflag, size = 0x8, scoped, tag = 'scoped memory for attention_pool2d.1']
    #allocation4 [shape = 'u8[2048]{0}', space=vmem, size = 0x800, scoped, tag = 'output window, operand 1']
    #allocation5 [shape = 's32[2]{0}', space=sflag, size = 0x8, scoped, tag = 'scoped memory for attention_pool2d.1']
    %18 = vsyncpa [#allocation3], 0
    %s19 = scalar_lea.sflag [#allocation3], 1
    %20 = vsyncpa %s19, 0
    %21 = vsyncpa [#allocation5], 0
    %s22 = scalar_lea.sflag [#allocation5], 1
    %23 = vsyncpa %s22, 0
    loop: start=0, step=1, limit=4
    $region2: #{attention_pool2d.1} parent=1 // loop_pre_header
      _
    $region3: #{attention_pool2d.1} parent=1 // loop_header
      %s25 = sphi 0, %s29
      %p26 = scmp.ge.s32.totalorder %s25, 4
      %s35 = sphi 0, %s37
      %s38 = sphi 0, %s35
      %s39 = sphi 0, %s38
      %s55 = sphi 0, %s39
      %s59 = sphi 0, %s59
      %s61 = sphi 0, %s59
      %s62 = sphi 0, %s61
      %s76 = sphi 0, %s62
      %s80 = sphi 0, %s80
      %s82 = sphi 0, %s80
      %s83 = sphi 0, %s82
      %s97 = sphi 0, %s83
      %s101 = sphi 0, %s101
      %s103 = sphi 0, %s101
      %s104 = sphi 0, %s103
      %s118 = sphi 0, %s104
      %s122 = sphi 0, %s122
      %s124 = sphi 0, %s122
      %s125 = sphi 0, %s124
      %s139 = sphi 0, %s125
      %s143 = sphi 0, %s143
      %s145 = sphi 0, %s143
      %s146 = sphi 0, %s145
      %s160 = sphi 0, %s146
      %s164 = sphi 0, %s164
      %s166 = sphi 0, %s164
      %s167 = sphi 0, %s166
      %s181 = sphi 0, %s167
      %s185 = sphi 0, %s185
      %s187 = sphi 0, %s185
      %s188 = sphi 0, %s187
      %s202 = sphi 0, %s188
      %s206 = sphi 0, %s206
      %s208 = sphi 0, %s206
      %s209 = sphi 0, %s208
      %s223 = sphi 0, %s209
      %s227 = sphi 0, %s227
      %s229 = sphi 0, %s227
      %s230 = sphi 0, %s229
      %s244 = sphi 0, %s230
      %s248 = sphi 0, %s248
      %s250 = sphi 0, %s248
      %s251 = sphi 0, %s250
      %s265 = sphi 0, %s251
      %s271 = sphi 0, %s273
      %s274 = sphi 0, %s271
      %s275 = sphi 0, %s274
      %s291 = sphi 0, %s275
      %s297 = sphi 0, %s299
      %s300 = sphi 0, %s297
      %s301 = sphi 0, %s300
      %s317 = sphi 0, %s301
    $region4: #{attention_pool2d.1} parent=1 // loop_header_branch
      %28 = sbr.rel (%p26) target = $region8
    $region5: #{attention_pool2d.1} parent=1 // loop_body
      %s30 = ssub.s32 %s25, 1
      %s31 = ssub.s32 %s25, 2
      %s32 = sadd.s32 %s25, 1
      %s33 = ssub.s32 %s25, %s32
      %p34 = scmp.eq.s32.totalorder %s33, 0
      %s36 = sadd.s32 %s35, 1
      %s37 = scalar_select %p34, %s35, %s36
      %p40 = pneg %p34
      %p41 = scmp.eq.s32.totalorder %s25, 1
      %p42 = por %p40, %p41
      %p43 = scmp.ne.s32.totalorder %s35, %s38
      %p44 = scmp.eq.s32.totalorder %s25, 0
      %p45 = por %p43, %p44
      %p46 = scmp.ne.s32.totalorder %s35, %s38
      %p47 = scmp.eq.s32.totalorder %s30, 1
      %p48 = por %p46, %p47
      %p49 = scmp.ne.s32.totalorder %s38, %s39
      %p50 = scmp.eq.s32.totalorder %s30, 0
      %p51 = por %p49, %p50
      %p52 = scmp.ne.s32.totalorder %s38, %s39
      %p53 = scmp.eq.s32.totalorder %s31, 1
      %p54 = por %p52, %p53
      %p56 = scmp.ne.s32.totalorder %s39, %s55
      %p57 = scmp.eq.s32.totalorder %s31, 0
      %p58 = por %p56, %p57
      %s60 = sadd.s32 %s59, 1
      %p63 = scmp.eq.s32.totalorder %s25, 1
      %p64 = scmp.ne.s32.totalorder %s59, %s61
      %p65 = scmp.eq.s32.totalorder %s25, 0
      %p66 = por %p64, %p65
      %p67 = scmp.ne.s32.totalorder %s59, %s61
      %p68 = scmp.eq.s32.totalorder %s30, 1
      %p69 = por %p67, %p68
      %p70 = scmp.ne.s32.totalorder %s61, %s62
      %p71 = scmp.eq.s32.totalorder %s30, 0
      %p72 = por %p70, %p71
      %p73 = scmp.ne.s32.totalorder %s61, %s62
      %p74 = scmp.eq.s32.totalorder %s31, 1
      %p75 = por %p73, %p74
      %p77 = scmp.ne.s32.totalorder %s62, %s76
      %p78 = scmp.eq.s32.totalorder %s31, 0
      %p79 = por %p77, %p78
      %s81 = sadd.s32 %s80, 1
      %p84 = scmp.eq.s32.totalorder %s25, 1
      %p85 = scmp.ne.s32.totalorder %s80, %s82
      %p86 = scmp.eq.s32.totalorder %s25, 0
      %p87 = por %p85, %p86
      %p88 = scmp.ne.s32.totalorder %s80, %s82
      %p89 = scmp.eq.s32.totalorder %s30, 1
      %p90 = por %p88, %p89
      %p91 = scmp.ne.s32.totalorder %s82, %s83
      %p92 = scmp.eq.s32.totalorder %s30, 0
      %p93 = por %p91, %p92
      %p94 = scmp.ne.s32.totalorder %s82, %s83
      %p95 = scmp.eq.s32.totalorder %s31, 1
      %p96 = por %p94, %p95
      %p98 = scmp.ne.s32.totalorder %s83, %s97
      %p99 = scmp.eq.s32.totalorder %s31, 0
      %p100 = por %p98, %p99
      %s102 = sadd.s32 %s101, 1
      %p105 = scmp.eq.s32.totalorder %s25, 1
      %p106 = scmp.ne.s32.totalorder %s101, %s103
      %p107 = scmp.eq.s32.totalorder %s25, 0
      %p108 = por %p106, %p107
      %p109 = scmp.ne.s32.totalorder %s101, %s103
      %p110 = scmp.eq.s32.totalorder %s30, 1
      %p111 = por %p109, %p110
      %p112 = scmp.ne.s32.totalorder %s103, %s104
      %p113 = scmp.eq.s32.totalorder %s30, 0
      %p114 = por %p112, %p113
      %p115 = scmp.ne.s32.totalorder %s103, %s104
      %p116 = scmp.eq.s32.totalorder %s31, 1
      %p117 = por %p115, %p116
      %p119 = scmp.ne.s32.totalorder %s104, %s118
      %p120 = scmp.eq.s32.totalorder %s31, 0
      %p121 = por %p119, %p120
      %s123 = sadd.s32 %s122, 1
      %p126 = scmp.eq.s32.totalorder %s25, 1
      %p127 = scmp.ne.s32.totalorder %s122, %s124
      %p128 = scmp.eq.s32.totalorder %s25, 0
      %p129 = por %p127, %p128
      %p130 = scmp.ne.s32.totalorder %s122, %s124
      %p131 = scmp.eq.s32.totalorder %s30, 1
      %p132 = por %p130, %p131
      %p133 = scmp.ne.s32.totalorder %s124, %s125
      %p134 = scmp.eq.s32.totalorder %s30, 0
      %p135 = por %p133, %p134
      %p136 = scmp.ne.s32.totalorder %s124, %s125
      %p137 = scmp.eq.s32.totalorder %s31, 1
      %p138 = por %p136, %p137
      %p140 = scmp.ne.s32.totalorder %s125, %s139
      %p141 = scmp.eq.s32.totalorder %s31, 0
      %p142 = por %p140, %p141
      %s144 = sadd.s32 %s143, 1
      %p147 = scmp.eq.s32.totalorder %s25, 1
      %p148 = scmp.ne.s32.totalorder %s143, %s145
      %p149 = scmp.eq.s32.totalorder %s25, 0
      %p150 = por %p148, %p149
      %p151 = scmp.ne.s32.totalorder %s143, %s145
      %p152 = scmp.eq.s32.totalorder %s30, 1
      %p153 = por %p151, %p152
      %p154 = scmp.ne.s32.totalorder %s145, %s146
      %p155 = scmp.eq.s32.totalorder %s30, 0
      %p156 = por %p154, %p155
      %p157 = scmp.ne.s32.totalorder %s145, %s146
      %p158 = scmp.eq.s32.totalorder %s31, 1
      %p159 = por %p157, %p158
      %p161 = scmp.ne.s32.totalorder %s146, %s160
      %p162 = scmp.eq.s32.totalorder %s31, 0
      %p163 = por %p161, %p162
      %s165 = sadd.s32 %s164, 1
      %p168 = scmp.eq.s32.totalorder %s25, 1
      %p169 = scmp.ne.s32.totalorder %s164, %s166
      %p170 = scmp.eq.s32.totalorder %s25, 0
      %p171 = por %p169, %p170
      %p172 = scmp.ne.s32.totalorder %s164, %s166
      %p173 = scmp.eq.s32.totalorder %s30, 1
      %p174 = por %p172, %p173
      %p175 = scmp.ne.s32.totalorder %s166, %s167
      %p176 = scmp.eq.s32.totalorder %s30, 0
      %p177 = por %p175, %p176
      %p178 = scmp.ne.s32.totalorder %s166, %s167
      %p179 = scmp.eq.s32.totalorder %s31, 1
      %p180 = por %p178, %p179
      %p182 = scmp.ne.s32.totalorder %s167, %s181
      %p183 = scmp.eq.s32.totalorder %s31, 0
      %p184 = por %p182, %p183
      %s186 = sadd.s32 %s185, 1
      %p189 = scmp.eq.s32.totalorder %s25, 1
      %p190 = scmp.ne.s32.totalorder %s185, %s187
      %p191 = scmp.eq.s32.totalorder %s25, 0
      %p192 = por %p190, %p191
      %p193 = scmp.ne.s32.totalorder %s185, %s187
      %p194 = scmp.eq.s32.totalorder %s30, 1
      %p195 = por %p193, %p194
      %p196 = scmp.ne.s32.totalorder %s187, %s188
      %p197 = scmp.eq.s32.totalorder %s30, 0
      %p198 = por %p196, %p197
      %p199 = scmp.ne.s32.totalorder %s187, %s188
      %p200 = scmp.eq.s32.totalorder %s31, 1
      %p201 = por %p199, %p200
      %p203 = scmp.ne.s32.totalorder %s188, %s202
      %p204 = scmp.eq.s32.totalorder %s31, 0
      %p205 = por %p203, %p204
      %s207 = sadd.s32 %s206, 1
      %p210 = scmp.eq.s32.totalorder %s25, 1
      %p211 = scmp.ne.s32.totalorder %s206, %s208
      %p212 = scmp.eq.s32.totalorder %s25, 0
      %p213 = por %p211, %p212
      %p214 = scmp.ne.s32.totalorder %s206, %s208
      %p215 = scmp.eq.s32.totalorder %s30, 1
      %p216 = por %p214, %p215
      %p217 = scmp.ne.s32.totalorder %s208, %s209
      %p218 = scmp.eq.s32.totalorder %s30, 0
      %p219 = por %p217, %p218
      %p220 = scmp.ne.s32.totalorder %s208, %s209
      %p221 = scmp.eq.s32.totalorder %s31, 1
      %p222 = por %p220, %p221
      %p224 = scmp.ne.s32.totalorder %s209, %s223
      %p225 = scmp.eq.s32.totalorder %s31, 0
      %p226 = por %p224, %p225
      %s228 = sadd.s32 %s227, 1
      %p231 = scmp.eq.s32.totalorder %s25, 1
      %p232 = scmp.ne.s32.totalorder %s227, %s229
      %p233 = scmp.eq.s32.totalorder %s25, 0
      %p234 = por %p232, %p233
      %p235 = scmp.ne.s32.totalorder %s227, %s229
      %p236 = scmp.eq.s32.totalorder %s30, 1
      %p237 = por %p235, %p236
      %p238 = scmp.ne.s32.totalorder %s229, %s230
      %p239 = scmp.eq.s32.totalorder %s30, 0
      %p240 = por %p238, %p239
      %p241 = scmp.ne.s32.totalorder %s229, %s230
      %p242 = scmp.eq.s32.totalorder %s31, 1
      %p243 = por %p241, %p242
      %p245 = scmp.ne.s32.totalorder %s230, %s244
      %p246 = scmp.eq.s32.totalorder %s31, 0
      %p247 = por %p245, %p246
      %s249 = sadd.s32 %s248, 1
      %p252 = scmp.eq.s32.totalorder %s25, 1
      %p253 = scmp.ne.s32.totalorder %s248, %s250
      %p254 = scmp.eq.s32.totalorder %s25, 0
      %p255 = por %p253, %p254
      %p256 = scmp.ne.s32.totalorder %s248, %s250
      %p257 = scmp.eq.s32.totalorder %s30, 1
      %p258 = por %p256, %p257
      %p259 = scmp.ne.s32.totalorder %s250, %s251
      %p260 = scmp.eq.s32.totalorder %s30, 0
      %p261 = por %p259, %p260
      %p262 = scmp.ne.s32.totalorder %s250, %s251
      %p263 = scmp.eq.s32.totalorder %s31, 1
      %p264 = por %p262, %p263
      %p266 = scmp.ne.s32.totalorder %s251, %s265
      %p267 = scmp.eq.s32.totalorder %s31, 0
      %p268 = por %p266, %p267
      %s269 = ssub.s32 %s25, %s32
      %p270 = scmp.eq.s32.totalorder %s269, 0
      %s272 = sadd.s32 %s271, 1
      %s273 = scalar_select %p270, %s271, %s272
      %p276 = pneg %p270
      %p277 = scmp.eq.s32.totalorder %s25, 1
      %p278 = por %p276, %p277
      %p279 = scmp.ne.s32.totalorder %s271, %s274
      %p280 = scmp.eq.s32.totalorder %s25, 0
      %p281 = por %p279, %p280
      %p282 = scmp.ne.s32.totalorder %s271, %s274
      %p283 = scmp.eq.s32.totalorder %s30, 1
      %p284 = por %p282, %p283
      %p285 = scmp.ne.s32.totalorder %s274, %s275
      %p286 = scmp.eq.s32.totalorder %s30, 0
      %p287 = por %p285, %p286
      %p288 = scmp.ne.s32.totalorder %s274, %s275
      %p289 = scmp.eq.s32.totalorder %s31, 1
      %p290 = por %p288, %p289
      %p292 = scmp.ne.s32.totalorder %s275, %s291
      %p293 = scmp.eq.s32.totalorder %s31, 0
      %p294 = por %p292, %p293
      %s295 = ssub.s32 %s25, %s32
      %p296 = scmp.eq.s32.totalorder %s295, 0
      %s298 = sadd.s32 %s297, 1
      %s299 = scalar_select %p296, %s297, %s298
      %p302 = pneg %p296
      %p303 = scmp.eq.s32.totalorder %s25, 1
      %p304 = por %p302, %p303
      %p305 = scmp.ne.s32.totalorder %s297, %s300
      %p306 = scmp.eq.s32.totalorder %s25, 0
      %p307 = por %p305, %p306
      %p308 = scmp.ne.s32.totalorder %s297, %s300
      %p309 = scmp.eq.s32.totalorder %s30, 1
      %p310 = por %p308, %p309
      %p311 = scmp.ne.s32.totalorder %s300, %s301
      %p312 = scmp.eq.s32.totalorder %s30, 0
      %p313 = por %p311, %p312
      %p314 = scmp.ne.s32.totalorder %s300, %s301
      %p315 = scmp.eq.s32.totalorder %s31, 1
      %p316 = por %p314, %p315
      %p318 = scmp.ne.s32.totalorder %s301, %s317
      %p319 = scmp.eq.s32.totalorder %s31, 0
      %p320 = por %p318, %p319
      %p321 = scmp.le.s32.totalorder 1, %s25
      %p322 = scmp.lt.s32.totalorder %s25, 3
      %p323 = pnand %p321, %p322
      %p324 = pneg %p323
      // Predicated region
      $region9: #{attention_pool2d.1} parent=5 // pred_check
        _
      $region10: #{attention_pool2d.1} parent=5 // pred_check_branch
        %326 = sbr.rel (%p323) target = $region12
      $region11: #{attention_pool2d.1} parent=5 // pred_region
        %s327 = ssub.s32 %s25, 1
        // Predicated region
        $region13: #{attention_pool2d.1} parent=11 // pred_check
          %p328 = pneg %p72
        $region14: #{attention_pool2d.1} parent=11 // pred_check_branch
          %330 = sbr.rel (%p328) target = $region16
        $region15: #{attention_pool2d.1} parent=11 // pred_region
          _
        $region16: #{attention_pool2d.1} parent=11 // pred_fallthru
          _
        // Predicated region
        $region17: #{attention_pool2d.1} parent=11 // pred_check
          %p331 = pneg %p93
        $region18: #{attention_pool2d.1} parent=11 // pred_check_branch
          %333 = sbr.rel (%p331) target = $region20
        $region19: #{attention_pool2d.1} parent=11 // pred_region
          _
        $region20: #{attention_pool2d.1} parent=11 // pred_fallthru
          _
        // Predicated region
        $region21: #{attention_pool2d.1} parent=11 // pred_check
          %p334 = pneg %p114
        $region22: #{attention_pool2d.1} parent=11 // pred_check_branch
          %336 = sbr.rel (%p334) target = $region24
        $region23: #{attention_pool2d.1} parent=11 // pred_region
          _
        $region24: #{attention_pool2d.1} parent=11 // pred_fallthru
          _
        // Predicated region
        $region25: #{attention_pool2d.1} parent=11 // pred_check
          %p337 = pneg %p135
        $region26: #{attention_pool2d.1} parent=11 // pred_check_branch
          %339 = sbr.rel (%p337) target = $region28
        $region27: #{attention_pool2d.1} parent=11 // pred_region
          _
        $region28: #{attention_pool2d.1} parent=11 // pred_fallthru
          _
        // Predicated region
        $region29: #{attention_pool2d.1} parent=11 // pred_check
          %p340 = pneg %p156
        $region30: #{attention_pool2d.1} parent=11 // pred_check_branch
          %342 = sbr.rel (%p340) target = $region32
        $region31: #{attention_pool2d.1} parent=11 // pred_region
          _
        $region32: #{attention_pool2d.1} parent=11 // pred_fallthru
          _
        // Predicated region
        $region33: #{attention_pool2d.1} parent=11 // pred_check
          %p343 = pneg %p177
        $region34: #{attention_pool2d.1} parent=11 // pred_check_branch
          %345 = sbr.rel (%p343) target = $region36
        $region35: #{attention_pool2d.1} parent=11 // pred_region
          _
        $region36: #{attention_pool2d.1} parent=11 // pred_fallthru
          _
        // Predicated region
        $region37: #{attention_pool2d.1} parent=11 // pred_check
          %p346 = pneg %p198
        $region38: #{attention_pool2d.1} parent=11 // pred_check_branch
          %348 = sbr.rel (%p346) target = $region40
        $region39: #{attention_pool2d.1} parent=11 // pred_region
          _
        $region40: #{attention_pool2d.1} parent=11 // pred_fallthru
          _
        // Predicated region
        $region41: #{attention_pool2d.1} parent=11 // pred_check
          %p349 = pneg %p219
        $region42: #{attention_pool2d.1} parent=11 // pred_check_branch
          %351 = sbr.rel (%p349) target = $region44
        $region43: #{attention_pool2d.1} parent=11 // pred_region
          _
        $region44: #{attention_pool2d.1} parent=11 // pred_fallthru
          _
        // Predicated region
        $region45: #{attention_pool2d.1} parent=11 // pred_check
          %p352 = pneg %p240
        $region46: #{attention_pool2d.1} parent=11 // pred_check_branch
          %354 = sbr.rel (%p352) target = $region48
        $region47: #{attention_pool2d.1} parent=11 // pred_region
          _
        $region48: #{attention_pool2d.1} parent=11 // pred_fallthru
          _
        // Predicated region
        $region49: #{attention_pool2d.1} parent=11 // pred_check
          %p355 = pneg %p261
        $region50: #{attention_pool2d.1} parent=11 // pred_check_branch
          %357 = sbr.rel (%p355) target = $region52
        $region51: #{attention_pool2d.1} parent=11 // pred_region
          _
        $region52: #{attention_pool2d.1} parent=11 // pred_fallthru
          _
      $region12: #{attention_pool2d.1} parent=5 // pred_fallthru
        _
      %p358 = scmp.lt.s32.totalorder %s25, 2
      // Predicated region
      $region53: #{attention_pool2d.1} parent=5 // pred_check
        %p359 = pneg %p358
      $region54: #{attention_pool2d.1} parent=5 // pred_check_branch
        %361 = sbr.rel (%p359) target = $region56
      $region55: #{attention_pool2d.1} parent=5 // pred_region
        // Predicated region
        $region57: #{attention_pool2d.1} parent=55 // pred_check
          %p362 = pneg %p45
        $region58: #{attention_pool2d.1} parent=55 // pred_check_branch
          %364 = sbr.rel (%p362) target = $region60
        $region59: #{attention_pool2d.1} parent=55 // pred_region
          %s365 = smul.u32 2, %s25
          %p366 = scmp.lt.s32.totalorder %s365, 3
          %s367 = scalar_select %p366, %s365, 3
          %s368 = smul.addr %s367, 8
          %s369 = smul.addr %s368, 8
          %s370 = scalar_lea.vmem %s0, %s369
          %s371 = smul.u32 2, %s25
        $region60: #{attention_pool2d.1} parent=55 // pred_fallthru
          _
      $region56: #{attention_pool2d.1} parent=5 // pred_fallthru
        _
      %p372 = scmp.le.s32.totalorder 1, %s25
      %p373 = scmp.lt.s32.totalorder %s25, 3
      %p374 = pnand %p372, %p373
      %p375 = pneg %p374
      // Predicated region
      $region61: #{attention_pool2d.1} parent=5 // pred_check
        _
      $region62: #{attention_pool2d.1} parent=5 // pred_check_branch
        %377 = sbr.rel (%p374) target = $region64
      $region63: #{attention_pool2d.1} parent=5 // pred_region
        %s378 = ssub.s32 %s25, 1
        %s379 = smul.u32 2, %s30
        %p380 = scmp.lt.s32.totalorder %s379, 3
        %s381 = scalar_select %p380, %s379, 3
        %s382 = smul.addr %s381, 8
        %s383 = smul.addr %s382, 8
        %s384 = scalar_lea.vmem %s0, %s383
        %p385 = pneg %p51
        %p386 = pneg %p48
        %p387 = pneg %p72
        %p388 = pneg %p69
        %p389 = pneg %p93
        %p390 = pneg %p90
        %p391 = pneg %p114
        %p392 = pneg %p111
        %p393 = pneg %p135
        %p394 = pneg %p132
        %p395 = pneg %p156
        %p396 = pneg %p153
        %p397 = pneg %p177
        %p398 = pneg %p174
        %p399 = pneg %p198
        %p400 = pneg %p195
        %p401 = pneg %p219
        %p402 = pneg %p216
        %p403 = pneg %p240
        %p404 = pneg %p237
        %p405 = pneg %p261
        %p406 = pneg %p258
        %p407 = pneg %p287
        %p408 = pneg %p284
        %s409 = sand.u32 %s274, 1
        %s410 = scalar_lea.sflag [#allocation3], %s409
        %s411 = sand.u32 %s274, 1
        %s412 = smul.addr %s411, 2
        %s413 = scalar_lea.vmem [#allocation2], %s412
        %p414 = pneg %p313
        %p415 = pneg %p310
        %s416 = sand.u32 %s300, 1
        %s417 = scalar_lea.sflag [#allocation5], %s416
        %s418 = sand.u32 %s300, 1
        %s419 = smul.addr %s418, 2
        %s420 = scalar_lea.vmem [#allocation4], %s419
        %s421 = smul.u32 2, %s30
        %p422 = scmp.lt.s32.totalorder %s421, 3
        %s423 = scalar_select %p422, %s421, 3
        %s424 = smul.addr %s423, 8
        %s425 = smul.addr %s424, 8
        %s426 = scalar_lea.vmem %s0, %s425
        %s427 = smul.u32 2, %s30
        %s428 = smul.u32 2, %s30
        %s429 = smul.u32 2, %s30
        %v430 = vld [vmem:[%s1] sm:$0x1]
        %v431 = vld [vmem:[%s2] sm:$0xff]
        %v432 = vld [vmem:[%s2 + $0x8] sm:$0xff]
        %v433 = vld [vmem:[%s2 + $0x10] sm:$0xff]
        %v434 = vld [vmem:[%s2 + $0x18] sm:$0xff]
        %v435 = vld [vmem:[%s2 + $0x20] sm:$0xff]
        %v436 = vld [vmem:[%s2 + $0x28] sm:$0xff]
        %v437 = vld [vmem:[%s2 + $0x30] sm:$0xff]
        %v438 = vld [vmem:[%s2 + $0x38] sm:$0xff]
        %v439 = vld [vmem:[%s426] sm:$0xff]
        %v440 = vld [vmem:[%s426 + $0x8] sm:$0xff]
        %v441 = vld [vmem:[%s426 + $0x10] sm:$0xff]
        %v442 = vld [vmem:[%s426 + $0x18] sm:$0xff]
        %v443 = vld [vmem:[%s426 + $0x20] sm:$0xff]
        %v444 = vld [vmem:[%s426 + $0x28] sm:$0xff]
        %v445 = vld [vmem:[%s426 + $0x30] sm:$0xff]
        %v446 = vld [vmem:[%s426 + $0x38] sm:$0xff]
        %447 = vxpose.xlu0.b32.start [1/16] %v439, 128
        %448 = vxpose.xlu0.b32.cont [2/16] %v440, 128
        %449 = vxpose.xlu0.b32.cont [3/16] %v441, 128
        %450 = vxpose.xlu0.b32.cont [4/16] %v442, 128
        %451 = vxpose.xlu0.b32.cont [5/16] %v443, 128
        %452 = vxpose.xlu0.b32.cont [6/16] %v444, 128
        %453 = vxpose.xlu0.b32.cont [7/16] %v445, 128
        %454 = vxpose.xlu0.b32.cont [8/16] %v446, 128
        %455 = vxpose.xlu0.b32.cont [9/16] 0.0, 128
        %456 = vxpose.xlu0.b32.cont [10/16] 0.0, 128
        %457 = vxpose.xlu0.b32.cont [11/16] 0.0, 128
        %458 = vxpose.xlu0.b32.cont [12/16] 0.0, 128
        %459 = vxpose.xlu0.b32.cont [13/16] 0.0, 128
        %460 = vxpose.xlu0.b32.cont [14/16] 0.0, 128
        %461 = vxpose.xlu0.b32.cont [15/16] 0.0, 128
        %462 = vxpose.xlu0.b32.end [16/16] 0.0, 128
        %v463 = vpop.trf.xlu0
        %v464 = vpop.trf.xlu0
        %v465 = vpop.trf.xlu0
        %v466 = vpop.trf.xlu0
        %v467 = vpop.trf.xlu0
        %v468 = vpop.trf.xlu0
        %v469 = vpop.trf.xlu0
        %v470 = vpop.trf.xlu0
        %v471 = vpop.trf.xlu0
        %v472 = vpop.trf.xlu0
        %v473 = vpop.trf.xlu0
        %v474 = vpop.trf.xlu0
        %v475 = vpop.trf.xlu0
        %v476 = vpop.trf.xlu0
        %v477 = vpop.trf.xlu0
        %v478 = vpop.trf.xlu0
        %v479 = vadd.f32 %v463, %v431
        %v480 = vadd.f32 %v464, %v432
        %v481 = vadd.f32 %v465, %v433
        %v482 = vadd.f32 %v466, %v434
        %v483 = vadd.f32 %v467, %v435
        %v484 = vadd.f32 %v468, %v436
        %v485 = vadd.f32 %v469, %v437
        %v486 = vadd.f32 %v470, %v438
        %vm487 = vcmask 523264
        %v488 = vsel %vm487, %v463, 0.0
        %v489 = vsel %vm487, %v464, 0.0
        %v490 = vadd.f32 %v488, %v489
        %v491 = vsel %vm487, %v465, 0.0
        %v492 = vadd.f32 %v490, %v491
        %v493 = vsel %vm487, %v466, 0.0
        %v494 = vadd.f32 %v492, %v493
        %v495 = vsel %vm487, %v467, 0.0
        %v496 = vadd.f32 %v494, %v495
        %v497 = vsel %vm487, %v468, 0.0
        %v498 = vadd.f32 %v496, %v497
        %v499 = vsel %vm487, %v469, 0.0
        %v500 = vadd.f32 %v498, %v499
        %v501 = vsel %vm487, %v470, 0.0
        %v502 = vadd.f32 %v500, %v501
        %v503 = vrot.slane %v502, 4
        %v504 = vadd.f32 %v502, %v503
        %v505 = vrot.slane %v504, 2
        %v506 = vadd.f32 %v504, %v505
        %v507 = vrot.slane %v506, 1
        %v508 = vadd.f32 %v506, %v507
        %v509 = vrcp.pop 64.0
        %v510 = vmul.f32 %v508, %v509
        %v511 = vadd.f32 %v510, %v430
        %s512 = scalar_lea.vmem %s426, 64
        %v513 = vld [vmem:[%s512] sm:$0xff]
        %v514 = vld [vmem:[%s512 + $0x8] sm:$0xff]
        %v515 = vld [vmem:[%s512 + $0x10] sm:$0xff]
        %v516 = vld [vmem:[%s512 + $0x18] sm:$0xff]
        %v517 = vld [vmem:[%s512 + $0x20] sm:$0xff]
        %v518 = vld [vmem:[%s512 + $0x28] sm:$0xff]
        %v519 = vld [vmem:[%s512 + $0x30] sm:$0xff]
        %v520 = vld [vmem:[%s512 + $0x38] sm:$0xff]
        %521 = vxpose.xlu0.b32.start [1/16] %v513, 128
        %522 = vxpose.xlu0.b32.cont [2/16] %v514, 128
        %523 = vxpose.xlu0.b32.cont [3/16] %v515, 128
        %524 = vxpose.xlu0.b32.cont [4/16] %v516, 128
        %525 = vxpose.xlu0.b32.cont [5/16] %v517, 128
        %526 = vxpose.xlu0.b32.cont [6/16] %v518, 128
        %527 = vxpose.xlu0.b32.cont [7/16] %v519, 128
        %528 = vxpose.xlu0.b32.cont [8/16] %v520, 128
        %529 = vxpose.xlu0.b32.cont [9/16] 0.0, 128
        %530 = vxpose.xlu0.b32.cont [10/16] 0.0, 128
        %531 = vxpose.xlu0.b32.cont [11/16] 0.0, 128
        %532 = vxpose.xlu0.b32.cont [12/16] 0.0, 128
        %533 = vxpose.xlu0.b32.cont [13/16] 0.0, 128
        %534 = vxpose.xlu0.b32.cont [14/16] 0.0, 128
        %535 = vxpose.xlu0.b32.cont [15/16] 0.0, 128
        %536 = vxpose.xlu0.b32.end [16/16] 0.0, 128
        %v537 = vpop.trf.xlu0
        %v538 = vpop.trf.xlu0
        %v539 = vpop.trf.xlu0
        %v540 = vpop.trf.xlu0
        %v541 = vpop.trf.xlu0
        %v542 = vpop.trf.xlu0
        %v543 = vpop.trf.xlu0
        %v544 = vpop.trf.xlu0
        %v545 = vpop.trf.xlu0
        %v546 = vpop.trf.xlu0
        %v547 = vpop.trf.xlu0
        %v548 = vpop.trf.xlu0
        %v549 = vpop.trf.xlu0
        %v550 = vpop.trf.xlu0
        %v551 = vpop.trf.xlu0
        %v552 = vpop.trf.xlu0
        %v553 = vadd.f32 %v537, %v431
        %v554 = vadd.f32 %v538, %v432
        %v555 = vadd.f32 %v539, %v433
        %v556 = vadd.f32 %v540, %v434
        %v557 = vadd.f32 %v541, %v435
        %v558 = vadd.f32 %v542, %v436
        %v559 = vadd.f32 %v543, %v437
        %v560 = vadd.f32 %v544, %v438
        %v561 = vsel %vm487, %v537, 0.0
        %v562 = vsel %vm487, %v538, 0.0
        %v563 = vadd.f32 %v561, %v562
        %v564 = vsel %vm487, %v539, 0.0
        %v565 = vadd.f32 %v563, %v564
        %v566 = vsel %vm487, %v540, 0.0
        %v567 = vadd.f32 %v565, %v566
        %v568 = vsel %vm487, %v541, 0.0
        %v569 = vadd.f32 %v567, %v568
        %v570 = vsel %vm487, %v542, 0.0
        %v571 = vadd.f32 %v569, %v570
        %v572 = vsel %vm487, %v543, 0.0
        %v573 = vadd.f32 %v571, %v572
        %v574 = vsel %vm487, %v544, 0.0
        %v575 = vadd.f32 %v573, %v574
        %v576 = vrot.slane %v575, 4
        %v577 = vadd.f32 %v575, %v576
        %v578 = vrot.slane %v577, 2
        %v579 = vadd.f32 %v577, %v578
        %v580 = vrot.slane %v579, 1
        %v581 = vadd.f32 %v579, %v580
        %v582 = vmul.f32 %v581, %v509
        %v583 = vadd.f32 %v582, %v430
        %v585 = vrot.slane %v583, 7
        %vm587 = vcmask 1040384
        %v588 = vsel %vm587, %v511, %v585
        %v589 = vld [vmem:[%s5] sm:$0xff]
        %v590 = vld [vmem:[%s5 + $0x8] sm:$0xff]
        %v591 = vld [vmem:[%s5 + $0x10] sm:$0xff]
        %v592 = vld [vmem:[%s5 + $0x18] sm:$0xff]
        %v593 = vld [vmem:[%s5 + $0x20] sm:$0xff]
        %v594 = vld [vmem:[%s5 + $0x28] sm:$0xff]
        %v595 = vld [vmem:[%s5 + $0x30] sm:$0xff]
        %v596 = vld [vmem:[%s5 + $0x38] sm:$0xff]
        %v597 = vld [vmem:[%s6] sm:$0x1]
        %v599 = vlaneseq
        %v600 = vshrl.u32 %v599, 7
        %v601 = vsub.s32 0, %v600
        %v602 = vrot.slane %v597, %v601
        %v605 = vsel %vm487, %v479, 0
        %v608 = vsel %vm487, %v480, 0
        %v611 = vsel %vm487, %v481, 0
        %v614 = vsel %vm487, %v482, 0
        %v617 = vsel %vm487, %v483, 0
        %v620 = vsel %vm487, %v484, 0
        %v623 = vsel %vm487, %v485, 0
        %v626 = vsel %vm487, %v486, 0
        %v629 = vsel %vm487, %v553, 0
        %v632 = vsel %vm487, %v554, 0
        %v635 = vsel %vm487, %v555, 0
        %v638 = vsel %vm487, %v556, 0
        %v641 = vsel %vm487, %v557, 0
        %v644 = vsel %vm487, %v558, 0
        %v647 = vsel %vm487, %v559, 0
        %v650 = vsel %vm487, %v560, 0
        %652 = vmatprep.subr.mxu0 0.0
        %653 = vmatpush1.msra.mxu0 %v589
        %654 = vmatprep.subr.mxu0 0.0
        %655 = vmatpush1.msra.mxu0 %v590
        %656 = vmatprep.subr.mxu0 0.0
        %657 = vmatpush1.msra.mxu0 %v591
        %658 = vmatprep.subr.mxu0 0.0
        %659 = vmatpush1.msra.mxu0 %v592
        %660 = vmatprep.subr.mxu0 0.0
        %661 = vmatpush1.msra.mxu0 %v593
        %662 = vmatprep.subr.mxu0 0.0
        %663 = vmatpush1.msra.mxu0 %v594
        %664 = vmatprep.subr.mxu0 0.0
        %665 = vmatpush1.msra.mxu0 %v595
        %666 = vmatprep.subr.mxu0 0.0
        %667 = vmatpush1.msra.mxu0 %v596
        %668 = vmatprep.subr.mxu0 0.0
        %669 = vmatpush1.msra.mxu0 0.0
        %670 = vmatprep.subr.mxu0 0.0
        %671 = vmatpush1.msra.mxu0 0.0
        %672 = vmatprep.subr.mxu0 0.0
        %673 = vmatpush1.msra.mxu0 0.0
        %674 = vmatprep.subr.mxu0 0.0
        %675 = vmatpush1.msra.mxu0 0.0
        %676 = vmatprep.subr.mxu0 0.0
        %677 = vmatpush1.msra.mxu0 0.0
        %678 = vmatprep.subr.mxu0 0.0
        %679 = vmatpush1.msra.mxu0 0.0
        %680 = vmatprep.subr.mxu0 0.0
        %681 = vmatpush1.msra.mxu0 0.0
        %682 = vmatprep.subr.mxu0 0.0
        %683 = vmatpush1.msra.mxu0 0.0
        %684 = vmatprep.subr.mxu0 0.0
        %685 = vmatpush1.msra.mxu0 0.0
        %686 = vmatprep.subr.mxu0 0.0
        %687 = vmatpush1.msra.mxu0 0.0
        %688 = vmatprep.subr.mxu0 0.0
        %689 = vmatpush1.msra.mxu0 0.0
        %690 = vmatprep.subr.mxu0 0.0
        %691 = vmatpush1.msra.mxu0 0.0
        %692 = vmatprep.subr.mxu0 0.0
        %693 = vmatpush1.msra.mxu0 0.0
        %694 = vmatprep.subr.mxu0 0.0
        %695 = vmatpush1.msra.mxu0 0.0
        %696 = vmatprep.subr.mxu0 0.0
        %697 = vmatpush1.msra.mxu0 0.0
        %698 = vmatprep.subr.mxu0 0.0
        %699 = vmatpush1.msra.mxu0 0.0
        %700 = vmatprep.subr.mxu0 0.0
        %701 = vmatpush1.msra.mxu0 0.0
        %702 = vmatprep.subr.mxu0 0.0
        %703 = vmatpush1.msra.mxu0 0.0
        %704 = vmatprep.subr.mxu0 0.0
        %705 = vmatpush1.msra.mxu0 0.0
        %706 = vmatprep.subr.mxu0 0.0
        %707 = vmatpush1.msra.mxu0 0.0
        %708 = vmatprep.subr.mxu0 0.0
        %709 = vmatpush1.msra.mxu0 0.0
        %710 = vmatprep.subr.mxu0 0.0
        %711 = vmatpush1.msra.mxu0 0.0
        %712 = vmatprep.subr.mxu0 0.0
        %713 = vmatpush1.msra.mxu0 0.0
        %714 = vmatprep.subr.mxu0 0.0
        %715 = vmatpush1.msra.mxu0 0.0
        %716 = vmatprep.mubr.f32.mxu0 0.0
        %717 = vmatmul.mubr.f32.gmra.mrb[0].mxu0 %v605
        %v718 = vpop.f32.mrb[0].mxu0
        %v719 = vadd.f32 %v602, %v718
        %v720 = vpop.f32.mrb[0].mxu0
        %721 = vmatprep.mubr.f32.mxu0 0.0
        %722 = vmatmul.mubr.f32.gmra.mrb[0].mxu0 %v608
        %v723 = vpop.f32.mrb[0].mxu0
        %v724 = vadd.f32 %v602, %v723
        %v725 = vpop.f32.mrb[0].mxu0
        %726 = vmatprep.mubr.f32.mxu0 0.0
        %727 = vmatmul.mubr.f32.gmra.mrb[0].mxu0 %v611
        %v728 = vpop.f32.mrb[0].mxu0
        %v729 = vadd.f32 %v602, %v728
        %v730 = vpop.f32.mrb[0].mxu0
        %731 = vmatprep.mubr.f32.mxu0 0.0
        %732 = vmatmul.mubr.f32.gmra.mrb[0].mxu0 %v614
        %v733 = vpop.f32.mrb[0].mxu0
        %v734 = vadd.f32 %v602, %v733
        %v735 = vpop.f32.mrb[0].mxu0
        %736 = vmatprep.mubr.f32.mxu0 0.0
        %737 = vmatmul.mubr.f32.gmra.mrb[0].mxu0 %v617
        %v738 = vpop.f32.mrb[0].mxu0
        %v739 = vadd.f32 %v602, %v738
        %v740 = vpop.f32.mrb[0].mxu0
        %741 = vmatprep.mubr.f32.mxu0 0.0
        %742 = vmatmul.mubr.f32.gmra.mrb[0].mxu0 %v620
        %v743 = vpop.f32.mrb[0].mxu0
        %v744 = vadd.f32 %v602, %v743
        %v745 = vpop.f32.mrb[0].mxu0
        %746 = vmatprep.mubr.f32.mxu0 0.0
        %747 = vmatmul.mubr.f32.gmra.mrb[0].mxu0 %v623
        %v748 = vpop.f32.mrb[0].mxu0
        %v749 = vadd.f32 %v602, %v748
        %v750 = vpop.f32.mrb[0].mxu0
        %751 = vmatprep.mubr.f32.mxu0 0.0
        %752 = vmatmul.mubr.f32.gmra.mrb[0].mxu0 %v626
        %v753 = vpop.f32.mrb[0].mxu0
        %v754 = vadd.f32 %v602, %v753
        %v755 = vpop.f32.mrb[0].mxu0
        %756 = vmatprep.mubr.f32.mxu0 0.0
        %757 = vmatmul.mubr.f32.gmra.mrb[0].mxu0 %v629
        %v758 = vpop.f32.mrb[0].mxu0
        %v759 = vadd.f32 %v602, %v758
        %v760 = vpop.f32.mrb[0].mxu0
        %761 = vmatprep.mubr.f32.mxu0 0.0
        %762 = vmatmul.mubr.f32.gmra.mrb[0].mxu0 %v632
        %v763 = vpop.f32.mrb[0].mxu0
        %v764 = vadd.f32 %v602, %v763
        %v765 = vpop.f32.mrb[0].mxu0
        %766 = vmatprep.mubr.f32.mxu0 0.0
        %767 = vmatmul.mubr.f32.gmra.mrb[0].mxu0 %v635
        %v768 = vpop.f32.mrb[0].mxu0
        %v769 = vadd.f32 %v602, %v768
        %v770 = vpop.f32.mrb[0].mxu0
        %771 = vmatprep.mubr.f32.mxu0 0.0
        %772 = vmatmul.mubr.f32.gmra.mrb[0].mxu0 %v638
        %v773 = vpop.f32.mrb[0].mxu0
        %v774 = vadd.f32 %v602, %v773
        %v775 = vpop.f32.mrb[0].mxu0
        %776 = vmatprep.mubr.f32.mxu0 0.0
        %777 = vmatmul.mubr.f32.gmra.mrb[0].mxu0 %v641
        %v778 = vpop.f32.mrb[0].mxu0
        %v779 = vadd.f32 %v602, %v778
        %v780 = vpop.f32.mrb[0].mxu0
        %781 = vmatprep.mubr.f32.mxu0 0.0
        %782 = vmatmul.mubr.f32.gmra.mrb[0].mxu0 %v644
        %v783 = vpop.f32.mrb[0].mxu0
        %v784 = vadd.f32 %v602, %v783
        %v785 = vpop.f32.mrb[0].mxu0
        %786 = vmatprep.mubr.f32.mxu0 0.0
        %787 = vmatmul.mubr.f32.gmra.mrb[0].mxu0 %v647
        %v788 = vpop.f32.mrb[0].mxu0
        %v789 = vadd.f32 %v602, %v788
        %v790 = vpop.f32.mrb[0].mxu0
        %791 = vmatprep.mubr.f32.mxu0 0.0
        %792 = vmatmul.mubr.f32.gmra.mrb[0].mxu0 %v650
        %v793 = vpop.f32.mrb[0].mxu0
        %v794 = vadd.f32 %v602, %v793
        %v795 = vpop.f32.mrb[0].mxu0
        %796 = vdwg.mxu0
        %v798 = vsel %vm487, %v588, 0
        %800 = vmatprep.subr.mxu0 0.0
        %801 = vmatpush1.msra.mxu0 %v589
        %802 = vmatprep.subr.mxu0 0.0
        %803 = vmatpush1.msra.mxu0 %v590
        %804 = vmatprep.subr.mxu0 0.0
        %805 = vmatpush1.msra.mxu0 %v591
        %806 = vmatprep.subr.mxu0 0.0
        %807 = vmatpush1.msra.mxu0 %v592
        %808 = vmatprep.subr.mxu0 0.0
        %809 = vmatpush1.msra.mxu0 %v593
        %810 = vmatprep.subr.mxu0 0.0
        %811 = vmatpush1.msra.mxu0 %v594
        %812 = vmatprep.subr.mxu0 0.0
        %813 = vmatpush1.msra.mxu0 %v595
        %814 = vmatprep.subr.mxu0 0.0
        %815 = vmatpush1.msra.mxu0 %v596
        %816 = vmatprep.subr.mxu0 0.0
        %817 = vmatpush1.msra.mxu0 0.0
        %818 = vmatprep.subr.mxu0 0.0
        %819 = vmatpush1.msra.mxu0 0.0
        %820 = vmatprep.subr.mxu0 0.0
        %821 = vmatpush1.msra.mxu0 0.0
        %822 = vmatprep.subr.mxu0 0.0
        %823 = vmatpush1.msra.mxu0 0.0
        %824 = vmatprep.subr.mxu0 0.0
        %825 = vmatpush1.msra.mxu0 0.0
        %826 = vmatprep.subr.mxu0 0.0
        %827 = vmatpush1.msra.mxu0 0.0
        %828 = vmatprep.subr.mxu0 0.0
        %829 = vmatpush1.msra.mxu0 0.0
        %830 = vmatprep.subr.mxu0 0.0
        %831 = vmatpush1.msra.mxu0 0.0
        %832 = vmatprep.subr.mxu0 0.0
        %833 = vmatpush1.msra.mxu0 0.0
        %834 = vmatprep.subr.mxu0 0.0
        %835 = vmatpush1.msra.mxu0 0.0
        %836 = vmatprep.subr.mxu0 0.0
        %837 = vmatpush1.msra.mxu0 0.0
        %838 = vmatprep.subr.mxu0 0.0
        %839 = vmatpush1.msra.mxu0 0.0
        %840 = vmatprep.subr.mxu0 0.0
        %841 = vmatpush1.msra.mxu0 0.0
        %842 = vmatprep.subr.mxu0 0.0
        %843 = vmatpush1.msra.mxu0 0.0
        %844 = vmatprep.subr.mxu0 0.0
        %845 = vmatpush1.msra.mxu0 0.0
        %846 = vmatprep.subr.mxu0 0.0
        %847 = vmatpush1.msra.mxu0 0.0
        %848 = vmatprep.subr.mxu0 0.0
        %849 = vmatpush1.msra.mxu0 0.0
        %850 = vmatprep.subr.mxu0 0.0
        %851 = vmatpush1.msra.mxu0 0.0
        %852 = vmatprep.subr.mxu0 0.0
        %853 = vmatpush1.msra.mxu0 0.0
        %854 = vmatprep.subr.mxu0 0.0
        %855 = vmatpush1.msra.mxu0 0.0
        %856 = vmatprep.subr.mxu0 0.0
        %857 = vmatpush1.msra.mxu0 0.0
        %858 = vmatprep.subr.mxu0 0.0
        %859 = vmatpush1.msra.mxu0 0.0
        %860 = vmatprep.subr.mxu0 0.0
        %861 = vmatpush1.msra.mxu0 0.0
        %862 = vmatprep.subr.mxu0 0.0
        %863 = vmatpush1.msra.mxu0 0.0
        %864 = vmatprep.mubr.f32.mxu0 0.0
        %865 = vmatmul.mubr.f32.gmra.mrb[0].mxu0 %v798
        %v866 = vpop.f32.mrb[0].mxu0
        %v867 = vadd.f32 %v602, %v866
        %v868 = vpop.f32.mrb[0].mxu0
        %869 = vdwg.mxu0
        %v870 = vld [vmem:[%s3] sm:$0xff]
        %v871 = vld [vmem:[%s3 + $0x8] sm:$0xff]
        %v872 = vld [vmem:[%s3 + $0x10] sm:$0xff]
        %v873 = vld [vmem:[%s3 + $0x18] sm:$0xff]
        %v874 = vld [vmem:[%s3 + $0x20] sm:$0xff]
        %v875 = vld [vmem:[%s3 + $0x28] sm:$0xff]
        %v876 = vld [vmem:[%s3 + $0x30] sm:$0xff]
        %v877 = vld [vmem:[%s3 + $0x38] sm:$0xff]
        %v878 = vld [vmem:[%s4] sm:$0x1]
        %v880 = vlaneseq
        %v881 = vshrl.u32 %v880, 7
        %v882 = vsub.s32 0, %v881
        %v883 = vrot.slane %v878, %v882
        %885 = vmatprep.subr.mxu0 0.0
        %886 = vmatpush1.msra.mxu0 %v870
        %887 = vmatprep.subr.mxu0 0.0
        %888 = vmatpush1.msra.mxu0 %v871
        %889 = vmatprep.subr.mxu0 0.0
        %890 = vmatpush1.msra.mxu0 %v872
        %891 = vmatprep.subr.mxu0 0.0
        %892 = vmatpush1.msra.mxu0 %v873
        %893 = vmatprep.subr.mxu0 0.0
        %894 = vmatpush1.msra.mxu0 %v874
        %895 = vmatprep.subr.mxu0 0.0
        %896 = vmatpush1.msra.mxu0 %v875
        %897 = vmatprep.subr.mxu0 0.0
        %898 = vmatpush1.msra.mxu0 %v876
        %899 = vmatprep.subr.mxu0 0.0
        %900 = vmatpush1.msra.mxu0 %v877
        %901 = vmatprep.subr.mxu0 0.0
        %902 = vmatpush1.msra.mxu0 0.0
        %903 = vmatprep.subr.mxu0 0.0
        %904 = vmatpush1.msra.mxu0 0.0
        %905 = vmatprep.subr.mxu0 0.0
        %906 = vmatpush1.msra.mxu0 0.0
        %907 = vmatprep.subr.mxu0 0.0
        %908 = vmatpush1.msra.mxu0 0.0
        %909 = vmatprep.subr.mxu0 0.0
        %910 = vmatpush1.msra.mxu0 0.0
        %911 = vmatprep.subr.mxu0 0.0
        %912 = vmatpush1.msra.mxu0 0.0
        %913 = vmatprep.subr.mxu0 0.0
        %914 = vmatpush1.msra.mxu0 0.0
        %915 = vmatprep.subr.mxu0 0.0
        %916 = vmatpush1.msra.mxu0 0.0
        %917 = vmatprep.subr.mxu0 0.0
        %918 = vmatpush1.msra.mxu0 0.0
        %919 = vmatprep.subr.mxu0 0.0
        %920 = vmatpush1.msra.mxu0 0.0
        %921 = vmatprep.subr.mxu0 0.0
        %922 = vmatpush1.msra.mxu0 0.0
        %923 = vmatprep.subr.mxu0 0.0
        %924 = vmatpush1.msra.mxu0 0.0
        %925 = vmatprep.subr.mxu0 0.0
        %926 = vmatpush1.msra.mxu0 0.0
        %927 = vmatprep.subr.mxu0 0.0
        %928 = vmatpush1.msra.mxu0 0.0
        %929 = vmatprep.subr.mxu0 0.0
        %930 = vmatpush1.msra.mxu0 0.0
        %931 = vmatprep.subr.mxu0 0.0
        %932 = vmatpush1.msra.mxu0 0.0
        %933 = vmatprep.subr.mxu0 0.0
        %934 = vmatpush1.msra.mxu0 0.0
        %935 = vmatprep.subr.mxu0 0.0
        %936 = vmatpush1.msra.mxu0 0.0
        %937 = vmatprep.subr.mxu0 0.0
        %938 = vmatpush1.msra.mxu0 0.0
        %939 = vmatprep.subr.mxu0 0.0
        %940 = vmatpush1.msra.mxu0 0.0
        %941 = vmatprep.subr.mxu0 0.0
        %942 = vmatpush1.msra.mxu0 0.0
        %943 = vmatprep.subr.mxu0 0.0
        %944 = vmatpush1.msra.mxu0 0.0
        %945 = vmatprep.subr.mxu0 0.0
        %946 = vmatpush1.msra.mxu0 0.0
        %947 = vmatprep.subr.mxu0 0.0
        %948 = vmatpush1.msra.mxu0 0.0
        %949 = vmatprep.mubr.f32.mxu0 0.0
        %950 = vmatmul.mubr.f32.gmra.mrb[0].mxu0 %v798
        %v951 = vpop.f32.mrb[0].mxu0
        %v952 = vadd.f32 %v883, %v951
        %v953 = vpop.f32.mrb[0].mxu0
        %954 = vdwg.mxu0
        %v955 = vld [vmem:[%s7] sm:$0xff]
        %v956 = vld [vmem:[%s7 + $0x8] sm:$0xff]
        %v957 = vld [vmem:[%s7 + $0x10] sm:$0xff]
        %v958 = vld [vmem:[%s7 + $0x18] sm:$0xff]
        %v959 = vld [vmem:[%s7 + $0x20] sm:$0xff]
        %v960 = vld [vmem:[%s7 + $0x28] sm:$0xff]
        %v961 = vld [vmem:[%s7 + $0x30] sm:$0xff]
        %v962 = vld [vmem:[%s7 + $0x38] sm:$0xff]
        %v963 = vld [vmem:[%s7 + $0x40] sm:$0xff]
        %v964 = vld [vmem:[%s7 + $0x48] sm:$0xff]
        %v965 = vld [vmem:[%s7 + $0x50] sm:$0xff]
        %v966 = vld [vmem:[%s7 + $0x58] sm:$0xff]
        %v967 = vld [vmem:[%s7 + $0x60] sm:$0xff]
        %v968 = vld [vmem:[%s7 + $0x68] sm:$0xff]
        %v969 = vld [vmem:[%s7 + $0x70] sm:$0xff]
        %v970 = vld [vmem:[%s7 + $0x78] sm:$0xff]
        %v971 = vld [vmem:[%s8] sm:$0xf]
        %v972 = vlaneseq
        %v973 = vshrl.u32 %v972, 7
        %v974 = vsub.s32 0, %v973
        %v975 = vrot.slane %v952, %v974
        %v976 = vmul.f32 %v975, %v719
        %v977 = vmul.f32 %v975, %v724
        %v978 = vmul.f32 %v975, %v729
        %v979 = vmul.f32 %v975, %v734
        %v980 = vmul.f32 %v975, %v739
        %v981 = vmul.f32 %v975, %v744
        %v982 = vmul.f32 %v975, %v749
        %v983 = vmul.f32 %v975, %v754
        %984 = vmatprep.subr.mxu0 0.0
        %985 = vmatpush1.msra.mxu0 %v955
        %986 = vmatprep.subr.mxu0 0.0
        %987 = vmatpush1.msra.mxu0 %v956
        %988 = vmatprep.subr.mxu0 0.0
        %989 = vmatpush1.msra.mxu0 %v957
        %990 = vmatprep.subr.mxu0 0.0
        %991 = vmatpush1.msra.mxu0 %v958
        %992 = vmatprep.subr.mxu0 0.0
        %993 = vmatpush1.msra.mxu0 %v959
        %994 = vmatprep.subr.mxu0 0.0
        %995 = vmatpush1.msra.mxu0 %v960
        %996 = vmatprep.subr.mxu0 0.0
        %997 = vmatpush1.msra.mxu0 %v961
        %998 = vmatprep.subr.mxu0 0.0
        %999 = vmatpush1.msra.mxu0 %v962
        %1000 = vmatprep.subr.mxu0 0.0
        %1001 = vmatpush1.msra.mxu0 %v963
        %1002 = vmatprep.subr.mxu0 0.0
        %1003 = vmatpush1.msra.mxu0 %v964
        %1004 = vmatprep.subr.mxu0 0.0
        %1005 = vmatpush1.msra.mxu0 %v965
        %1006 = vmatprep.subr.mxu0 0.0
        %1007 = vmatpush1.msra.mxu0 %v966
        %1008 = vmatprep.subr.mxu0 0.0
        %1009 = vmatpush1.msra.mxu0 %v967
        %1010 = vmatprep.subr.mxu0 0.0
        %1011 = vmatpush1.msra.mxu0 %v968
        %1012 = vmatprep.subr.mxu0 0.0
        %1013 = vmatpush1.msra.mxu0 %v969
        %1014 = vmatprep.subr.mxu0 0.0
        %1015 = vmatpush1.msra.mxu0 %v970
        %1016 = vmatprep.subr.mxu0 0.0
        %1017 = vmatpush1.msra.mxu0 0.0
        %1018 = vmatprep.subr.mxu0 0.0
        %1019 = vmatpush1.msra.mxu0 0.0
        %1020 = vmatprep.subr.mxu0 0.0
        %1021 = vmatpush1.msra.mxu0 0.0
        %1022 = vmatprep.subr.mxu0 0.0
        %1023 = vmatpush1.msra.mxu0 0.0
        %1024 = vmatprep.subr.mxu0 0.0
        %1025 = vmatpush1.msra.mxu0 0.0
        %1026 = vmatprep.subr.mxu0 0.0
        %1027 = vmatpush1.msra.mxu0 0.0
        %1028 = vmatprep.subr.mxu0 0.0
        %1029 = vmatpush1.msra.mxu0 0.0
        %1030 = vmatprep.subr.mxu0 0.0
        %1031 = vmatpush1.msra.mxu0 0.0
        %1032 = vmatprep.subr.mxu0 0.0
        %1033 = vmatpush1.msra.mxu0 0.0
        %1034 = vmatprep.subr.mxu0 0.0
        %1035 = vmatpush1.msra.mxu0 0.0
        %1036 = vmatprep.subr.mxu0 0.0
        %1037 = vmatpush1.msra.mxu0 0.0
        %1038 = vmatprep.subr.mxu0 0.0
        %1039 = vmatpush1.msra.mxu0 0.0
        %1040 = vmatprep.subr.mxu0 0.0
        %1041 = vmatpush1.msra.mxu0 0.0
        %1042 = vmatprep.subr.mxu0 0.0
        %1043 = vmatpush1.msra.mxu0 0.0
        %1044 = vmatprep.subr.mxu0 0.0
        %1045 = vmatpush1.msra.mxu0 0.0
        %1046 = vmatprep.subr.mxu0 0.0
        %1047 = vmatpush1.msra.mxu0 0.0
        %1048 = vmatprep.mubr.f32.mxu0 0.0
        %1049 = vmatmul.mubr.f32.gmra.mrb[0].mxu0 %v976
        %v1050 = vpop.f32.mrb[0].mxu0
        %v1051 = vadd.f32 0.0, %v1050
        %v1052 = vpop.f32.mrb[0].mxu0
        %1053 = vmatprep.mubr.f32.mxu0 0.0
        %1054 = vmatmul.mubr.f32.gmra.mrb[0].mxu0 %v977
        %v1055 = vpop.f32.mrb[0].mxu0
        %v1056 = vadd.f32 0.0, %v1055
        %v1057 = vpop.f32.mrb[0].mxu0
        %1058 = vmatprep.mubr.f32.mxu0 0.0
        %1059 = vmatmul.mubr.f32.gmra.mrb[0].mxu0 %v978
        %v1060 = vpop.f32.mrb[0].mxu0
        %v1061 = vadd.f32 0.0, %v1060
        %v1062 = vpop.f32.mrb[0].mxu0
        %1063 = vmatprep.mubr.f32.mxu0 0.0
        %1064 = vmatmul.mubr.f32.gmra.mrb[0].mxu0 %v979
        %v1065 = vpop.f32.mrb[0].mxu0
        %v1066 = vadd.f32 0.0, %v1065
        %v1067 = vpop.f32.mrb[0].mxu0
        %1068 = vmatprep.mubr.f32.mxu0 0.0
        %1069 = vmatmul.mubr.f32.gmra.mrb[0].mxu0 %v980
        %v1070 = vpop.f32.mrb[0].mxu0
        %v1071 = vadd.f32 0.0, %v1070
        %v1072 = vpop.f32.mrb[0].mxu0
        %1073 = vmatprep.mubr.f32.mxu0 0.0
        %1074 = vmatmul.mubr.f32.gmra.mrb[0].mxu0 %v981
        %v1075 = vpop.f32.mrb[0].mxu0
        %v1076 = vadd.f32 0.0, %v1075
        %v1077 = vpop.f32.mrb[0].mxu0
        %1078 = vmatprep.mubr.f32.mxu0 0.0
        %1079 = vmatmul.mubr.f32.gmra.mrb[0].mxu0 %v982
        %v1080 = vpop.f32.mrb[0].mxu0
        %v1081 = vadd.f32 0.0, %v1080
        %v1082 = vpop.f32.mrb[0].mxu0
        %1083 = vmatprep.mubr.f32.mxu0 0.0
        %1084 = vmatmul.mubr.f32.gmra.mrb[0].mxu0 %v983
        %v1085 = vpop.f32.mrb[0].mxu0
        %v1086 = vadd.f32 0.0, %v1085
        %v1087 = vpop.f32.mrb[0].mxu0
        %1088 = vdwg.mxu0
        %v1089 = vmul.f32 %v952, %v867
        %1090 = vmatprep.subr.mxu0 0.0
        %1091 = vmatpush1.msra.mxu0 %v955
        %1092 = vmatprep.subr.mxu0 0.0
        %1093 = vmatpush1.msra.mxu0 %v956
        %1094 = vmatprep.subr.mxu0 0.0
        %1095 = vmatpush1.msra.mxu0 %v957
        %1096 = vmatprep.subr.mxu0 0.0
        %1097 = vmatpush1.msra.mxu0 %v958
        %1098 = vmatprep.subr.mxu0 0.0
        %1099 = vmatpush1.msra.mxu0 %v959
        %1100 = vmatprep.subr.mxu0 0.0
        %1101 = vmatpush1.msra.mxu0 %v960
        %1102 = vmatprep.subr.mxu0 0.0
        %1103 = vmatpush1.msra.mxu0 %v961
        %1104 = vmatprep.subr.mxu0 0.0
        %1105 = vmatpush1.msra.mxu0 %v962
        %1106 = vmatprep.subr.mxu0 0.0
        %1107 = vmatpush1.msra.mxu0 %v963
        %1108 = vmatprep.subr.mxu0 0.0
        %1109 = vmatpush1.msra.mxu0 %v964
        %1110 = vmatprep.subr.mxu0 0.0
        %1111 = vmatpush1.msra.mxu0 %v965
        %1112 = vmatprep.subr.mxu0 0.0
        %1113 = vmatpush1.msra.mxu0 %v966
        %1114 = vmatprep.subr.mxu0 0.0
        %1115 = vmatpush1.msra.mxu0 %v967
        %1116 = vmatprep.subr.mxu0 0.0
        %1117 = vmatpush1.msra.mxu0 %v968
        %1118 = vmatprep.subr.mxu0 0.0
        %1119 = vmatpush1.msra.mxu0 %v969
        %1120 = vmatprep.subr.mxu0 0.0
        %1121 = vmatpush1.msra.mxu0 %v970
        %1122 = vmatprep.subr.mxu0 0.0
        %1123 = vmatpush1.msra.mxu0 0.0
        %1124 = vmatprep.subr.mxu0 0.0
        %1125 = vmatpush1.msra.mxu0 0.0
        %1126 = vmatprep.subr.mxu0 0.0
        %1127 = vmatpush1.msra.mxu0 0.0
        %1128 = vmatprep.subr.mxu0 0.0
        %1129 = vmatpush1.msra.mxu0 0.0
        %1130 = vmatprep.subr.mxu0 0.0
        %1131 = vmatpush1.msra.mxu0 0.0
        %1132 = vmatprep.subr.mxu0 0.0
        %1133 = vmatpush1.msra.mxu0 0.0
        %1134 = vmatprep.subr.mxu0 0.0
        %1135 = vmatpush1.msra.mxu0 0.0
        %1136 = vmatprep.subr.mxu0 0.0
        %1137 = vmatpush1.msra.mxu0 0.0
        %1138 = vmatprep.subr.mxu0 0.0
        %1139 = vmatpush1.msra.mxu0 0.0
        %1140 = vmatprep.subr.mxu0 0.0
        %1141 = vmatpush1.msra.mxu0 0.0
        %1142 = vmatprep.subr.mxu0 0.0
        %1143 = vmatpush1.msra.mxu0 0.0
        %1144 = vmatprep.subr.mxu0 0.0
        %1145 = vmatpush1.msra.mxu0 0.0
        %1146 = vmatprep.subr.mxu0 0.0
        %1147 = vmatpush1.msra.mxu0 0.0
        %1148 = vmatprep.subr.mxu0 0.0
        %1149 = vmatpush1.msra.mxu0 0.0
        %1150 = vmatprep.subr.mxu0 0.0
        %1151 = vmatpush1.msra.mxu0 0.0
        %1152 = vmatprep.subr.mxu0 0.0
        %1153 = vmatpush1.msra.mxu0 0.0
        %1154 = vmatprep.mubr.f32.mxu0 0.0
        %1155 = vmatmul.mubr.f32.gmra.mrb[0].mxu0 %v1089
        %v1156 = vpop.f32.mrb[0].mxu0
        %v1157 = vadd.f32 0.0, %v1156
        %v1158 = vpop.f32.mrb[0].mxu0
        %1159 = vdwg.mxu0
        %vm1160 = vcmask 31744
        %v1161 = vsel %vm1160, %v1051, -inf
        %v1162 = vsel %vm1160, %v1056, -inf
        %v1163 = vsel %vm1160, %v1061, -inf
        %v1164 = vsel %vm1160, %v1066, -inf
        %v1165 = vsel %vm1160, %v1071, -inf
        %v1166 = vmax.f32 %v1161, %v1165
        %v1167 = vsel %vm1160, %v1076, -inf
        %v1168 = vmax.f32 %v1162, %v1167
        %v1169 = vsel %vm1160, %v1081, -inf
        %v1170 = vmax.f32 %v1163, %v1169
        %v1171 = vsel %vm1160, %v1086, -inf
        %v1172 = vmax.f32 %v1164, %v1171
        %v1173 = vmax.f32 %v1166, %v1168
        %v1174 = vmax.f32 %v1170, %v1172
        %v1175 = vmax.f32 %v1173, %v1174
        %v1176 = vrot.slane %v1175, 4
        %v1177 = vmax.f32 %v1175, %v1176
        %v1178 = vrot.slane %v1177, 2
        %v1179 = vmax.f32 %v1177, %v1178
        %v1180 = vrot.slane %v1179, 1
        %v1181 = vmax.f32 %v1179, %v1180
        %v1182 = vmax.f32 %v1181, %v1157
        %v1183 = vlaneseq
        %v1184 = vshrl.u32 %v1183, 7
        %v1185 = vsub.s32 0, %v1184
        %v1186 = vrot.slane %v1182, %v1185
        %v1187 = vsub.f32 %v1051, %v1186
        %v1188 = vsub.f32 %v1056, %v1186
        %v1189 = vsub.f32 %v1061, %v1186
        %v1190 = vsub.f32 %v1066, %v1186
        %v1191 = vsub.f32 %v1071, %v1186
        %v1192 = vsub.f32 %v1076, %v1186
        %v1193 = vsub.f32 %v1081, %v1186
        %v1194 = vsub.f32 %v1086, %v1186
        %v1195 = vmul.f32 %v1187, 1.442695
        %v1196 = vpow.pop %v1195
        %v1197 = vmul.f32 %v1188, 1.442695
        %v1198 = vpow.pop %v1197
        %v1199 = vmul.f32 %v1189, 1.442695
        %v1200 = vpow.pop %v1199
        %v1201 = vmul.f32 %v1190, 1.442695
        %v1202 = vpow.pop %v1201
        %v1203 = vmul.f32 %v1191, 1.442695
        %v1204 = vpow.pop %v1203
        %v1205 = vmul.f32 %v1192, 1.442695
        %v1206 = vpow.pop %v1205
        %v1207 = vmul.f32 %v1193, 1.442695
        %v1208 = vpow.pop %v1207
        %v1209 = vmul.f32 %v1194, 1.442695
        %v1210 = vpow.pop %v1209
        %v1211 = vsub.f32 %v1157, %v1182
        %v1212 = vmul.f32 %v1211, 1.442695
        %v1213 = vpow.pop %v1212
        %v1214 = vsel %vm1160, %v1196, 0.0
        %v1215 = vsel %vm1160, %v1198, 0.0
        %v1216 = vadd.f32 %v1214, %v1215
        %v1217 = vsel %vm1160, %v1200, 0.0
        %v1218 = vadd.f32 %v1216, %v1217
        %v1219 = vsel %vm1160, %v1202, 0.0
        %v1220 = vadd.f32 %v1218, %v1219
        %v1221 = vsel %vm1160, %v1204, 0.0
        %v1222 = vadd.f32 %v1220, %v1221
        %v1223 = vsel %vm1160, %v1206, 0.0
        %v1224 = vadd.f32 %v1222, %v1223
        %v1225 = vsel %vm1160, %v1208, 0.0
        %v1226 = vadd.f32 %v1224, %v1225
        %v1227 = vsel %vm1160, %v1210, 0.0
        %v1228 = vadd.f32 %v1226, %v1227
        %v1229 = vrot.slane %v1228, 4
        %v1230 = vadd.f32 %v1228, %v1229
        %v1231 = vrot.slane %v1230, 2
        %v1232 = vadd.f32 %v1230, %v1231
        %v1233 = vrot.slane %v1232, 1
        %v1234 = vadd.f32 %v1232, %v1233
        %v1235 = vadd.f32 %v1234, %v1213
        %v1236 = vrcp.pop %v1235
        %v1237 = vmul.f32 1.0, %v1236
        %v1238 = vlaneseq
        %v1239 = vshrl.u32 %v1238, 7
        %v1240 = vsub.s32 0, %v1239
        %v1241 = vrot.slane %v1237, %v1240
        %v1242 = vmul.f32 %v1196, %v1241
        %v1243 = vmul.f32 %v1198, %v1241
        %v1244 = vmul.f32 %v1200, %v1241
        %v1245 = vmul.f32 %v1202, %v1241
        %v1246 = vmul.f32 %v1204, %v1241
        %v1247 = vmul.f32 %v1206, %v1241
        %v1248 = vmul.f32 %v1208, %v1241
        %v1249 = vmul.f32 %v1210, %v1241
        %v1250 = vmul.f32 %v1213, %v1237
        %v1252 = vsel %vm1160, %v1242, 0
        %v1255 = vsel %vm1160, %v1243, 0
        %v1258 = vsel %vm1160, %v1244, 0
        %v1261 = vsel %vm1160, %v1245, 0
        %v1264 = vsel %vm1160, %v1246, 0
        %v1267 = vsel %vm1160, %v1247, 0
        %v1270 = vsel %vm1160, %v1248, 0
        %v1273 = vsel %vm1160, %v1249, 0
        %vm1275 = vcmask 1043456
        %v1277 = vsel %vm1275, %v971, 0
        %1279 = vmatprep.subr.mxu0 0.0
        %1280 = vmatpush1.msra.mxu0 %v1277
        %1281 = vmatprep.subr.mxu0 0.0
        %1282 = vmatpush1.msra.mxu0 0.0
        %1283 = vmatprep.subr.mxu0 0.0
        %1284 = vmatpush1.msra.mxu0 0.0
        %1285 = vmatprep.subr.mxu0 0.0
        %1286 = vmatpush1.msra.mxu0 0.0
        %1287 = vmatprep.subr.mxu0 0.0
        %1288 = vmatpush1.msra.mxu0 0.0
        %1289 = vmatprep.subr.mxu0 0.0
        %1290 = vmatpush1.msra.mxu0 0.0
        %1291 = vmatprep.subr.mxu0 0.0
        %1292 = vmatpush1.msra.mxu0 0.0
        %1293 = vmatprep.subr.mxu0 0.0
        %1294 = vmatpush1.msra.mxu0 0.0
        %1295 = vmatprep.subr.mxu0 0.0
        %1296 = vmatpush1.msra.mxu0 0.0
        %1297 = vmatprep.subr.mxu0 0.0
        %1298 = vmatpush1.msra.mxu0 0.0
        %1299 = vmatprep.subr.mxu0 0.0
        %1300 = vmatpush1.msra.mxu0 0.0
        %1301 = vmatprep.subr.mxu0 0.0
        %1302 = vmatpush1.msra.mxu0 0.0
        %1303 = vmatprep.subr.mxu0 0.0
        %1304 = vmatpush1.msra.mxu0 0.0
        %1305 = vmatprep.subr.mxu0 0.0
        %1306 = vmatpush1.msra.mxu0 0.0
        %1307 = vmatprep.subr.mxu0 0.0
        %1308 = vmatpush1.msra.mxu0 0.0
        %1309 = vmatprep.subr.mxu0 0.0
        %1310 = vmatpush1.msra.mxu0 0.0
        %1311 = vmatprep.subr.mxu0 0.0
        %1312 = vmatpush1.msra.mxu0 0.0
        %1313 = vmatprep.subr.mxu0 0.0
        %1314 = vmatpush1.msra.mxu0 0.0
        %1315 = vmatprep.subr.mxu0 0.0
        %1316 = vmatpush1.msra.mxu0 0.0
        %1317 = vmatprep.subr.mxu0 0.0
        %1318 = vmatpush1.msra.mxu0 0.0
        %1319 = vmatprep.subr.mxu0 0.0
        %1320 = vmatpush1.msra.mxu0 0.0
        %1321 = vmatprep.subr.mxu0 0.0
        %1322 = vmatpush1.msra.mxu0 0.0
        %1323 = vmatprep.subr.mxu0 0.0
        %1324 = vmatpush1.msra.mxu0 0.0
        %1325 = vmatprep.subr.mxu0 0.0
        %1326 = vmatpush1.msra.mxu0 0.0
        %1327 = vmatprep.subr.mxu0 0.0
        %1328 = vmatpush1.msra.mxu0 0.0
        %1329 = vmatprep.subr.mxu0 0.0
        %1330 = vmatpush1.msra.mxu0 0.0
        %1331 = vmatprep.subr.mxu0 0.0
        %1332 = vmatpush1.msra.mxu0 0.0
        %1333 = vmatprep.subr.mxu0 0.0
        %1334 = vmatpush1.msra.mxu0 0.0
        %1335 = vmatprep.subr.mxu0 0.0
        %1336 = vmatpush1.msra.mxu0 0.0
        %1337 = vmatprep.subr.mxu0 0.0
        %1338 = vmatpush1.msra.mxu0 0.0
        %1339 = vmatprep.subr.mxu0 0.0
        %1340 = vmatpush1.msra.mxu0 0.0
        %1341 = vmatprep.subr.mxu0 0.0
        %1342 = vmatpush1.msra.mxu0 0.0
        %1343 = vmatprep.mubr.f32.mxu0 0.0
        %1344 = vmatmul.mubr.f32.gmra.mrb[0].mxu0 %v1252
        %v1345 = vpop.f32.mrb[0].mxu0
        %v1346 = vadd.f32 0.0, %v1345
        %v1347 = vpop.f32.mrb[0].mxu0
        %1348 = vmatprep.mubr.f32.mxu0 0.0
        %1349 = vmatmul.mubr.f32.gmra.mrb[0].mxu0 %v1255
        %v1350 = vpop.f32.mrb[0].mxu0
        %v1351 = vadd.f32 0.0, %v1350
        %v1352 = vpop.f32.mrb[0].mxu0
        %1353 = vmatprep.mubr.f32.mxu0 0.0
        %1354 = vmatmul.mubr.f32.gmra.mrb[0].mxu0 %v1258
        %v1355 = vpop.f32.mrb[0].mxu0
        %v1356 = vadd.f32 0.0, %v1355
        %v1357 = vpop.f32.mrb[0].mxu0
        %1358 = vmatprep.mubr.f32.mxu0 0.0
        %1359 = vmatmul.mubr.f32.gmra.mrb[0].mxu0 %v1261
        %v1360 = vpop.f32.mrb[0].mxu0
        %v1361 = vadd.f32 0.0, %v1360
        %v1362 = vpop.f32.mrb[0].mxu0
        %1363 = vmatprep.mubr.f32.mxu0 0.0
        %1364 = vmatmul.mubr.f32.gmra.mrb[0].mxu0 %v1264
        %v1365 = vpop.f32.mrb[0].mxu0
        %v1366 = vadd.f32 0.0, %v1365
        %v1367 = vpop.f32.mrb[0].mxu0
        %1368 = vmatprep.mubr.f32.mxu0 0.0
        %1369 = vmatmul.mubr.f32.gmra.mrb[0].mxu0 %v1267
        %v1370 = vpop.f32.mrb[0].mxu0
        %v1371 = vadd.f32 0.0, %v1370
        %v1372 = vpop.f32.mrb[0].mxu0
        %1373 = vmatprep.mubr.f32.mxu0 0.0
        %1374 = vmatmul.mubr.f32.gmra.mrb[0].mxu0 %v1270
        %v1375 = vpop.f32.mrb[0].mxu0
        %v1376 = vadd.f32 0.0, %v1375
        %v1377 = vpop.f32.mrb[0].mxu0
        %1378 = vmatprep.mubr.f32.mxu0 0.0
        %1379 = vmatmul.mubr.f32.gmra.mrb[0].mxu0 %v1273
        %v1380 = vpop.f32.mrb[0].mxu0
        %v1381 = vadd.f32 0.0, %v1380
        %v1382 = vpop.f32.mrb[0].mxu0
        %1383 = vdwg.mxu0
        %v1385 = vsel %vm1160, %v1250, 0
        %1387 = vmatprep.subr.mxu0 0.0
        %1388 = vmatpush1.msra.mxu0 %v1277
        %1389 = vmatprep.subr.mxu0 0.0
        %1390 = vmatpush1.msra.mxu0 0.0
        %1391 = vmatprep.subr.mxu0 0.0
        %1392 = vmatpush1.msra.mxu0 0.0
        %1393 = vmatprep.subr.mxu0 0.0
        %1394 = vmatpush1.msra.mxu0 0.0
        %1395 = vmatprep.subr.mxu0 0.0
        %1396 = vmatpush1.msra.mxu0 0.0
        %1397 = vmatprep.subr.mxu0 0.0
        %1398 = vmatpush1.msra.mxu0 0.0
        %1399 = vmatprep.subr.mxu0 0.0
        %1400 = vmatpush1.msra.mxu0 0.0
        %1401 = vmatprep.subr.mxu0 0.0
        %1402 = vmatpush1.msra.mxu0 0.0
        %1403 = vmatprep.subr.mxu0 0.0
        %1404 = vmatpush1.msra.mxu0 0.0
        %1405 = vmatprep.subr.mxu0 0.0
        %1406 = vmatpush1.msra.mxu0 0.0
        %1407 = vmatprep.subr.mxu0 0.0
        %1408 = vmatpush1.msra.mxu0 0.0
        %1409 = vmatprep.subr.mxu0 0.0
        %1410 = vmatpush1.msra.mxu0 0.0
        %1411 = vmatprep.subr.mxu0 0.0
        %1412 = vmatpush1.msra.mxu0 0.0
        %1413 = vmatprep.subr.mxu0 0.0
        %1414 = vmatpush1.msra.mxu0 0.0
        %1415 = vmatprep.subr.mxu0 0.0
        %1416 = vmatpush1.msra.mxu0 0.0
        %1417 = vmatprep.subr.mxu0 0.0
        %1418 = vmatpush1.msra.mxu0 0.0
        %1419 = vmatprep.subr.mxu0 0.0
        %1420 = vmatpush1.msra.mxu0 0.0
        %1421 = vmatprep.subr.mxu0 0.0
        %1422 = vmatpush1.msra.mxu0 0.0
        %1423 = vmatprep.subr.mxu0 0.0
        %1424 = vmatpush1.msra.mxu0 0.0
        %1425 = vmatprep.subr.mxu0 0.0
        %1426 = vmatpush1.msra.mxu0 0.0
        %1427 = vmatprep.subr.mxu0 0.0
        %1428 = vmatpush1.msra.mxu0 0.0
        %1429 = vmatprep.subr.mxu0 0.0
        %1430 = vmatpush1.msra.mxu0 0.0
        %1431 = vmatprep.subr.mxu0 0.0
        %1432 = vmatpush1.msra.mxu0 0.0
        %1433 = vmatprep.subr.mxu0 0.0
        %1434 = vmatpush1.msra.mxu0 0.0
        %1435 = vmatprep.subr.mxu0 0.0
        %1436 = vmatpush1.msra.mxu0 0.0
        %1437 = vmatprep.subr.mxu0 0.0
        %1438 = vmatpush1.msra.mxu0 0.0
        %1439 = vmatprep.subr.mxu0 0.0
        %1440 = vmatpush1.msra.mxu0 0.0
        %1441 = vmatprep.subr.mxu0 0.0
        %1442 = vmatpush1.msra.mxu0 0.0
        %1443 = vmatprep.subr.mxu0 0.0
        %1444 = vmatpush1.msra.mxu0 0.0
        %1445 = vmatprep.subr.mxu0 0.0
        %1446 = vmatpush1.msra.mxu0 0.0
        %1447 = vmatprep.subr.mxu0 0.0
        %1448 = vmatpush1.msra.mxu0 0.0
        %1449 = vmatprep.subr.mxu0 0.0
        %1450 = vmatpush1.msra.mxu0 0.0
        %1451 = vmatprep.mubr.f32.mxu0 0.0
        %1452 = vmatmul.mubr.f32.gmra.mrb[0].mxu0 %v1385
        %v1453 = vpop.f32.mrb[0].mxu0
        %v1454 = vadd.f32 0.0, %v1453
        %v1455 = vpop.f32.mrb[0].mxu0
        %1456 = vdwg.mxu0
        %v1457 = vmul.f32 %v1346, %v719
        %v1458 = vmul.f32 %v1351, %v724
        %v1459 = vmul.f32 %v1356, %v729
        %v1460 = vmul.f32 %v1361, %v734
        %v1461 = vmul.f32 %v1366, %v739
        %v1462 = vmul.f32 %v1371, %v744
        %v1463 = vmul.f32 %v1376, %v749
        %v1464 = vmul.f32 %v1381, %v754
        %v1465 = vadd.f32 %v1457, %v1458
        %v1466 = vadd.f32 %v1465, %v1459
        %v1467 = vadd.f32 %v1466, %v1460
        %v1468 = vadd.f32 %v1467, %v1461
        %v1469 = vadd.f32 %v1468, %v1462
        %v1470 = vadd.f32 %v1469, %v1463
        %v1471 = vadd.f32 %v1470, %v1464
        %v1472 = vrot.slane %v1471, 4
        %v1473 = vadd.f32 %v1471, %v1472
        %v1474 = vrot.slane %v1473, 2
        %v1475 = vadd.f32 %v1473, %v1474
        %v1476 = vrot.slane %v1475, 1
        %v1477 = vadd.f32 %v1475, %v1476
        %v1478 = vmul.f32 %v1454, %v867
        %v1479 = vadd.f32 %v1477, %v1478
        %1480 = vxpose.xlu0.b32.start [1/16] %v1242, 128
        %1481 = vxpose.xlu0.b32.cont [2/16] %v1243, 128
        %1482 = vxpose.xlu0.b32.cont [3/16] %v1244, 128
        %1483 = vxpose.xlu0.b32.cont [4/16] %v1245, 128
        %1484 = vxpose.xlu0.b32.cont [5/16] %v1246, 128
        %1485 = vxpose.xlu0.b32.cont [6/16] %v1247, 128
        %1486 = vxpose.xlu0.b32.cont [7/16] %v1248, 128
        %1487 = vxpose.xlu0.b32.cont [8/16] %v1249, 128
        %1488 = vxpose.xlu0.b32.cont [9/16] 0.0, 128
        %1489 = vxpose.xlu0.b32.cont [10/16] 0.0, 128
        %1490 = vxpose.xlu0.b32.cont [11/16] 0.0, 128
        %1491 = vxpose.xlu0.b32.cont [12/16] 0.0, 128
        %1492 = vxpose.xlu0.b32.cont [13/16] 0.0, 128
        %1493 = vxpose.xlu0.b32.cont [14/16] 0.0, 128
        %1494 = vxpose.xlu0.b32.cont [15/16] 0.0, 128
        %1495 = vxpose.xlu0.b32.end [16/16] 0.0, 128
        %v1496 = vpop.trf.xlu0
        %v1497 = vpop.trf.xlu0
        %v1498 = vpop.trf.xlu0
        %v1499 = vpop.trf.xlu0
        %v1500 = vpop.trf.xlu0
        %v1501 = vpop.trf.xlu0
        %v1502 = vpop.trf.xlu0
        %v1503 = vpop.trf.xlu0
        %v1504 = vpop.trf.xlu0
        %v1505 = vpop.trf.xlu0
        %v1506 = vpop.trf.xlu0
        %v1507 = vpop.trf.xlu0
        %v1508 = vpop.trf.xlu0
        %v1509 = vpop.trf.xlu0
        %v1510 = vpop.trf.xlu0
        %v1511 = vpop.trf.xlu0
        %vm1512 = vcmask 519168
        %v1513 = vsel %vm1512, %v1496, 0.0
        %v1514 = vrot.slane %v1513, 4
        %v1515 = vadd.f32 %v1513, %v1514
        %v1516 = vrot.slane %v1515, 2
        %v1517 = vadd.f32 %v1515, %v1516
        %v1518 = vrot.slane %v1517, 1
        %v1519 = vadd.f32 %v1517, %v1518
        %v1520 = vrcp.pop 4.0
        %v1521 = vmul.f32 %v1519, %v1520
        %vm1522 = vcmask 24576
        %v1523 = vsel %vm1522, %v1250, 0.0
        %1524 = vadd.xlane.f32.xlu0 %v1523
        %v1525 = vpop.xlane.xlu0 %1524
        %v1526 = vmul.f32 %v1525, %v1520
        %1528 = vrot.lane.b32.xlu0 %v1521, 1
        %v1529 = vpop.permute.xlu0 %1528
        %vm1531 = vcmask 7168
        %v1532 = vsel %vm1531, %v1526, %v1529
        %vm1533 = vcmask 524288
        %1534 = vst.msk [vmem:[%s420] sm:$0x1] %vm1533, %v1532
        %v1535 = vlaneseq
        %v1536 = vshrl.u32 %v1535, 7
        %v1537 = vsub.s32 1, %v1536
        %v1538 = vrot.slane %v952, %v1537
        %v1539 = vmul.f32 %v1538, %v759
        %v1540 = vmul.f32 %v1538, %v764
        %v1541 = vmul.f32 %v1538, %v769
        %v1542 = vmul.f32 %v1538, %v774
        %v1543 = vmul.f32 %v1538, %v779
        %v1544 = vmul.f32 %v1538, %v784
        %v1545 = vmul.f32 %v1538, %v789
        %v1546 = vmul.f32 %v1538, %v794
        %1547 = vmatprep.subr.mxu0 0.0
        %1548 = vmatpush1.msra.mxu0 %v955
        %1549 = vmatprep.subr.mxu0 0.0
        %1550 = vmatpush1.msra.mxu0 %v956
        %1551 = vmatprep.subr.mxu0 0.0
        %1552 = vmatpush1.msra.mxu0 %v957
        %1553 = vmatprep.subr.mxu0 0.0
        %1554 = vmatpush1.msra.mxu0 %v958
        %1555 = vmatprep.subr.mxu0 0.0
        %1556 = vmatpush1.msra.mxu0 %v959
        %1557 = vmatprep.subr.mxu0 0.0
        %1558 = vmatpush1.msra.mxu0 %v960
        %1559 = vmatprep.subr.mxu0 0.0
        %1560 = vmatpush1.msra.mxu0 %v961
        %1561 = vmatprep.subr.mxu0 0.0
        %1562 = vmatpush1.msra.mxu0 %v962
        %1563 = vmatprep.subr.mxu0 0.0
        %1564 = vmatpush1.msra.mxu0 %v963
        %1565 = vmatprep.subr.mxu0 0.0
        %1566 = vmatpush1.msra.mxu0 %v964
        %1567 = vmatprep.subr.mxu0 0.0
        %1568 = vmatpush1.msra.mxu0 %v965
        %1569 = vmatprep.subr.mxu0 0.0
        %1570 = vmatpush1.msra.mxu0 %v966
        %1571 = vmatprep.subr.mxu0 0.0
        %1572 = vmatpush1.msra.mxu0 %v967
        %1573 = vmatprep.subr.mxu0 0.0
        %1574 = vmatpush1.msra.mxu0 %v968
        %1575 = vmatprep.subr.mxu0 0.0
        %1576 = vmatpush1.msra.mxu0 %v969
        %1577 = vmatprep.subr.mxu0 0.0
        %1578 = vmatpush1.msra.mxu0 %v970
        %1579 = vmatprep.subr.mxu0 0.0
        %1580 = vmatpush1.msra.mxu0 0.0
        %1581 = vmatprep.subr.mxu0 0.0
        %1582 = vmatpush1.msra.mxu0 0.0
        %1583 = vmatprep.subr.mxu0 0.0
        %1584 = vmatpush1.msra.mxu0 0.0
        %1585 = vmatprep.subr.mxu0 0.0
        %1586 = vmatpush1.msra.mxu0 0.0
        %1587 = vmatprep.subr.mxu0 0.0
        %1588 = vmatpush1.msra.mxu0 0.0
        %1589 = vmatprep.subr.mxu0 0.0
        %1590 = vmatpush1.msra.mxu0 0.0
        %1591 = vmatprep.subr.mxu0 0.0
        %1592 = vmatpush1.msra.mxu0 0.0
        %1593 = vmatprep.subr.mxu0 0.0
        %1594 = vmatpush1.msra.mxu0 0.0
        %1595 = vmatprep.subr.mxu0 0.0
        %1596 = vmatpush1.msra.mxu0 0.0
        %1597 = vmatprep.subr.mxu0 0.0
        %1598 = vmatpush1.msra.mxu0 0.0
        %1599 = vmatprep.subr.mxu0 0.0
        %1600 = vmatpush1.msra.mxu0 0.0
        %1601 = vmatprep.subr.mxu0 0.0
        %1602 = vmatpush1.msra.mxu0 0.0
        %1603 = vmatprep.subr.mxu0 0.0
        %1604 = vmatpush1.msra.mxu0 0.0
        %1605 = vmatprep.subr.mxu0 0.0
        %1606 = vmatpush1.msra.mxu0 0.0
        %1607 = vmatprep.subr.mxu0 0.0
        %1608 = vmatpush1.msra.mxu0 0.0
        %1609 = vmatprep.subr.mxu0 0.0
        %1610 = vmatpush1.msra.mxu0 0.0
        %1611 = vmatprep.mubr.f32.mxu0 0.0
        %1612 = vmatmul.mubr.f32.gmra.mrb[0].mxu0 %v1539
        %v1613 = vpop.f32.mrb[0].mxu0
        %v1614 = vadd.f32 0.0, %v1613
        %v1615 = vpop.f32.mrb[0].mxu0
        %1616 = vmatprep.mubr.f32.mxu0 0.0
        %1617 = vmatmul.mubr.f32.gmra.mrb[0].mxu0 %v1540
        %v1618 = vpop.f32.mrb[0].mxu0
        %v1619 = vadd.f32 0.0, %v1618
        %v1620 = vpop.f32.mrb[0].mxu0
        %1621 = vmatprep.mubr.f32.mxu0 0.0
        %1622 = vmatmul.mubr.f32.gmra.mrb[0].mxu0 %v1541
        %v1623 = vpop.f32.mrb[0].mxu0
        %v1624 = vadd.f32 0.0, %v1623
        %v1625 = vpop.f32.mrb[0].mxu0
        %1626 = vmatprep.mubr.f32.mxu0 0.0
        %1627 = vmatmul.mubr.f32.gmra.mrb[0].mxu0 %v1542
        %v1628 = vpop.f32.mrb[0].mxu0
        %v1629 = vadd.f32 0.0, %v1628
        %v1630 = vpop.f32.mrb[0].mxu0
        %1631 = vmatprep.mubr.f32.mxu0 0.0
        %1632 = vmatmul.mubr.f32.gmra.mrb[0].mxu0 %v1543
        %v1633 = vpop.f32.mrb[0].mxu0
        %v1634 = vadd.f32 0.0, %v1633
        %v1635 = vpop.f32.mrb[0].mxu0
        %1636 = vmatprep.mubr.f32.mxu0 0.0
        %1637 = vmatmul.mubr.f32.gmra.mrb[0].mxu0 %v1544
        %v1638 = vpop.f32.mrb[0].mxu0
        %v1639 = vadd.f32 0.0, %v1638
        %v1640 = vpop.f32.mrb[0].mxu0
        %1641 = vmatprep.mubr.f32.mxu0 0.0
        %1642 = vmatmul.mubr.f32.gmra.mrb[0].mxu0 %v1545
        %v1643 = vpop.f32.mrb[0].mxu0
        %v1644 = vadd.f32 0.0, %v1643
        %v1645 = vpop.f32.mrb[0].mxu0
        %1646 = vmatprep.mubr.f32.mxu0 0.0
        %1647 = vmatmul.mubr.f32.gmra.mrb[0].mxu0 %v1546
        %v1648 = vpop.f32.mrb[0].mxu0
        %v1649 = vadd.f32 0.0, %v1648
        %v1650 = vpop.f32.mrb[0].mxu0
        %1651 = vdwg.mxu0
        %v1653 = vrot.slane %v1089, 1
        %1655 = vmatprep.subr.mxu0 0.0
        %1656 = vmatpush1.msra.mxu0 %v955
        %1657 = vmatprep.subr.mxu0 0.0
        %1658 = vmatpush1.msra.mxu0 %v956
        %1659 = vmatprep.subr.mxu0 0.0
        %1660 = vmatpush1.msra.mxu0 %v957
        %1661 = vmatprep.subr.mxu0 0.0
        %1662 = vmatpush1.msra.mxu0 %v958
        %1663 = vmatprep.subr.mxu0 0.0
        %1664 = vmatpush1.msra.mxu0 %v959
        %1665 = vmatprep.subr.mxu0 0.0
        %1666 = vmatpush1.msra.mxu0 %v960
        %1667 = vmatprep.subr.mxu0 0.0
        %1668 = vmatpush1.msra.mxu0 %v961
        %1669 = vmatprep.subr.mxu0 0.0
        %1670 = vmatpush1.msra.mxu0 %v962
        %1671 = vmatprep.subr.mxu0 0.0
        %1672 = vmatpush1.msra.mxu0 %v963
        %1673 = vmatprep.subr.mxu0 0.0
        %1674 = vmatpush1.msra.mxu0 %v964
        %1675 = vmatprep.subr.mxu0 0.0
        %1676 = vmatpush1.msra.mxu0 %v965
        %1677 = vmatprep.subr.mxu0 0.0
        %1678 = vmatpush1.msra.mxu0 %v966
        %1679 = vmatprep.subr.mxu0 0.0
        %1680 = vmatpush1.msra.mxu0 %v967
        %1681 = vmatprep.subr.mxu0 0.0
        %1682 = vmatpush1.msra.mxu0 %v968
        %1683 = vmatprep.subr.mxu0 0.0
        %1684 = vmatpush1.msra.mxu0 %v969
        %1685 = vmatprep.subr.mxu0 0.0
        %1686 = vmatpush1.msra.mxu0 %v970
        %1687 = vmatprep.subr.mxu0 0.0
        %1688 = vmatpush1.msra.mxu0 0.0
        %1689 = vmatprep.subr.mxu0 0.0
        %1690 = vmatpush1.msra.mxu0 0.0
        %1691 = vmatprep.subr.mxu0 0.0
        %1692 = vmatpush1.msra.mxu0 0.0
        %1693 = vmatprep.subr.mxu0 0.0
        %1694 = vmatpush1.msra.mxu0 0.0
        %1695 = vmatprep.subr.mxu0 0.0
        %1696 = vmatpush1.msra.mxu0 0.0
        %1697 = vmatprep.subr.mxu0 0.0
        %1698 = vmatpush1.msra.mxu0 0.0
        %1699 = vmatprep.subr.mxu0 0.0
        %1700 = vmatpush1.msra.mxu0 0.0
        %1701 = vmatprep.subr.mxu0 0.0
        %1702 = vmatpush1.msra.mxu0 0.0
        %1703 = vmatprep.subr.mxu0 0.0
        %1704 = vmatpush1.msra.mxu0 0.0
        %1705 = vmatprep.subr.mxu0 0.0
        %1706 = vmatpush1.msra.mxu0 0.0
        %1707 = vmatprep.subr.mxu0 0.0
        %1708 = vmatpush1.msra.mxu0 0.0
        %1709 = vmatprep.subr.mxu0 0.0
        %1710 = vmatpush1.msra.mxu0 0.0
        %1711 = vmatprep.subr.mxu0 0.0
        %1712 = vmatpush1.msra.mxu0 0.0
        %1713 = vmatprep.subr.mxu0 0.0
        %1714 = vmatpush1.msra.mxu0 0.0
        %1715 = vmatprep.subr.mxu0 0.0
        %1716 = vmatpush1.msra.mxu0 0.0
        %1717 = vmatprep.subr.mxu0 0.0
        %1718 = vmatpush1.msra.mxu0 0.0
        %1719 = vmatprep.mubr.f32.mxu0 0.0
        %1720 = vmatmul.mubr.f32.gmra.mrb[0].mxu0 %v1653
        %v1721 = vpop.f32.mrb[0].mxu0
        %v1722 = vadd.f32 0.0, %v1721
        %v1723 = vpop.f32.mrb[0].mxu0
        %1724 = vdwg.mxu0
        %v1725 = vsel %vm1160, %v1614, -inf
        %v1726 = vsel %vm1160, %v1619, -inf
        %v1727 = vsel %vm1160, %v1624, -inf
        %v1728 = vsel %vm1160, %v1629, -inf
        %v1729 = vsel %vm1160, %v1634, -inf
        %v1730 = vmax.f32 %v1725, %v1729
        %v1731 = vsel %vm1160, %v1639, -inf
        %v1732 = vmax.f32 %v1726, %v1731
        %v1733 = vsel %vm1160, %v1644, -inf
        %v1734 = vmax.f32 %v1727, %v1733
        %v1735 = vsel %vm1160, %v1649, -inf
        %v1736 = vmax.f32 %v1728, %v1735
        %v1737 = vmax.f32 %v1730, %v1732
        %v1738 = vmax.f32 %v1734, %v1736
        %v1739 = vmax.f32 %v1737, %v1738
        %v1740 = vrot.slane %v1739, 4
        %v1741 = vmax.f32 %v1739, %v1740
        %v1742 = vrot.slane %v1741, 2
        %v1743 = vmax.f32 %v1741, %v1742
        %v1744 = vrot.slane %v1743, 1
        %v1745 = vmax.f32 %v1743, %v1744
        %v1746 = vmax.f32 %v1745, %v1722
        %v1747 = vlaneseq
        %v1748 = vshrl.u32 %v1747, 7
        %v1749 = vsub.s32 0, %v1748
        %v1750 = vrot.slane %v1746, %v1749
        %v1751 = vsub.f32 %v1614, %v1750
        %v1752 = vsub.f32 %v1619, %v1750
        %v1753 = vsub.f32 %v1624, %v1750
        %v1754 = vsub.f32 %v1629, %v1750
        %v1755 = vsub.f32 %v1634, %v1750
        %v1756 = vsub.f32 %v1639, %v1750
        %v1757 = vsub.f32 %v1644, %v1750
        %v1758 = vsub.f32 %v1649, %v1750
        %v1759 = vmul.f32 %v1751, 1.442695
        %v1760 = vpow.pop %v1759
        %v1761 = vmul.f32 %v1752, 1.442695
        %v1762 = vpow.pop %v1761
        %v1763 = vmul.f32 %v1753, 1.442695
        %v1764 = vpow.pop %v1763
        %v1765 = vmul.f32 %v1754, 1.442695
        %v1766 = vpow.pop %v1765
        %v1767 = vmul.f32 %v1755, 1.442695
        %v1768 = vpow.pop %v1767
        %v1769 = vmul.f32 %v1756, 1.442695
        %v1770 = vpow.pop %v1769
        %v1771 = vmul.f32 %v1757, 1.442695
        %v1772 = vpow.pop %v1771
        %v1773 = vmul.f32 %v1758, 1.442695
        %v1774 = vpow.pop %v1773
        %v1775 = vsub.f32 %v1722, %v1746
        %v1776 = vmul.f32 %v1775, 1.442695
        %v1777 = vpow.pop %v1776
        %v1778 = vsel %vm1160, %v1760, 0.0
        %v1779 = vsel %vm1160, %v1762, 0.0
        %v1780 = vadd.f32 %v1778, %v1779
        %v1781 = vsel %vm1160, %v1764, 0.0
        %v1782 = vadd.f32 %v1780, %v1781
        %v1783 = vsel %vm1160, %v1766, 0.0
        %v1784 = vadd.f32 %v1782, %v1783
        %v1785 = vsel %vm1160, %v1768, 0.0
        %v1786 = vadd.f32 %v1784, %v1785
        %v1787 = vsel %vm1160, %v1770, 0.0
        %v1788 = vadd.f32 %v1786, %v1787
        %v1789 = vsel %vm1160, %v1772, 0.0
        %v1790 = vadd.f32 %v1788, %v1789
        %v1791 = vsel %vm1160, %v1774, 0.0
        %v1792 = vadd.f32 %v1790, %v1791
        %v1793 = vrot.slane %v1792, 4
        %v1794 = vadd.f32 %v1792, %v1793
        %v1795 = vrot.slane %v1794, 2
        %v1796 = vadd.f32 %v1794, %v1795
        %v1797 = vrot.slane %v1796, 1
        %v1798 = vadd.f32 %v1796, %v1797
        %v1799 = vadd.f32 %v1798, %v1777
        %v1800 = vrcp.pop %v1799
        %v1801 = vmul.f32 1.0, %v1800
        %v1802 = vlaneseq
        %v1803 = vshrl.u32 %v1802, 7
        %v1804 = vsub.s32 0, %v1803
        %v1805 = vrot.slane %v1801, %v1804
        %v1806 = vmul.f32 %v1760, %v1805
        %v1807 = vmul.f32 %v1762, %v1805
        %v1808 = vmul.f32 %v1764, %v1805
        %v1809 = vmul.f32 %v1766, %v1805
        %v1810 = vmul.f32 %v1768, %v1805
        %v1811 = vmul.f32 %v1770, %v1805
        %v1812 = vmul.f32 %v1772, %v1805
        %v1813 = vmul.f32 %v1774, %v1805
        %v1814 = vmul.f32 %v1777, %v1801
        %v1816 = vsel %vm1160, %v1806, 0
        %v1819 = vsel %vm1160, %v1807, 0
        %v1822 = vsel %vm1160, %v1808, 0
        %v1825 = vsel %vm1160, %v1809, 0
        %v1828 = vsel %vm1160, %v1810, 0
        %v1831 = vsel %vm1160, %v1811, 0
        %v1834 = vsel %vm1160, %v1812, 0
        %v1837 = vsel %vm1160, %v1813, 0
        %1839 = vmatprep.subr.mxu0 0.0
        %1840 = vmatpush1.msra.mxu0 %v1277
        %1841 = vmatprep.subr.mxu0 0.0
        %1842 = vmatpush1.msra.mxu0 0.0
        %1843 = vmatprep.subr.mxu0 0.0
        %1844 = vmatpush1.msra.mxu0 0.0
        %1845 = vmatprep.subr.mxu0 0.0
        %1846 = vmatpush1.msra.mxu0 0.0
        %1847 = vmatprep.subr.mxu0 0.0
        %1848 = vmatpush1.msra.mxu0 0.0
        %1849 = vmatprep.subr.mxu0 0.0
        %1850 = vmatpush1.msra.mxu0 0.0
        %1851 = vmatprep.subr.mxu0 0.0
        %1852 = vmatpush1.msra.mxu0 0.0
        %1853 = vmatprep.subr.mxu0 0.0
        %1854 = vmatpush1.msra.mxu0 0.0
        %1855 = vmatprep.subr.mxu0 0.0
        %1856 = vmatpush1.msra.mxu0 0.0
        %1857 = vmatprep.subr.mxu0 0.0
        %1858 = vmatpush1.msra.mxu0 0.0
        %1859 = vmatprep.subr.mxu0 0.0
        %1860 = vmatpush1.msra.mxu0 0.0
        %1861 = vmatprep.subr.mxu0 0.0
        %1862 = vmatpush1.msra.mxu0 0.0
        %1863 = vmatprep.subr.mxu0 0.0
        %1864 = vmatpush1.msra.mxu0 0.0
        %1865 = vmatprep.subr.mxu0 0.0
        %1866 = vmatpush1.msra.mxu0 0.0
        %1867 = vmatprep.subr.mxu0 0.0
        %1868 = vmatpush1.msra.mxu0 0.0
        %1869 = vmatprep.subr.mxu0 0.0
        %1870 = vmatpush1.msra.mxu0 0.0
        %1871 = vmatprep.subr.mxu0 0.0
        %1872 = vmatpush1.msra.mxu0 0.0
        %1873 = vmatprep.subr.mxu0 0.0
        %1874 = vmatpush1.msra.mxu0 0.0
        %1875 = vmatprep.subr.mxu0 0.0
        %1876 = vmatpush1.msra.mxu0 0.0
        %1877 = vmatprep.subr.mxu0 0.0
        %1878 = vmatpush1.msra.mxu0 0.0
        %1879 = vmatprep.subr.mxu0 0.0
        %1880 = vmatpush1.msra.mxu0 0.0
        %1881 = vmatprep.subr.mxu0 0.0
        %1882 = vmatpush1.msra.mxu0 0.0
        %1883 = vmatprep.subr.mxu0 0.0
        %1884 = vmatpush1.msra.mxu0 0.0
        %1885 = vmatprep.subr.mxu0 0.0
        %1886 = vmatpush1.msra.mxu0 0.0
        %1887 = vmatprep.subr.mxu0 0.0
        %1888 = vmatpush1.msra.mxu0 0.0
        %1889 = vmatprep.subr.mxu0 0.0
        %1890 = vmatpush1.msra.mxu0 0.0
        %1891 = vmatprep.subr.mxu0 0.0
        %1892 = vmatpush1.msra.mxu0 0.0
        %1893 = vmatprep.subr.mxu0 0.0
        %1894 = vmatpush1.msra.mxu0 0.0
        %1895 = vmatprep.subr.mxu0 0.0
        %1896 = vmatpush1.msra.mxu0 0.0
        %1897 = vmatprep.subr.mxu0 0.0
        %1898 = vmatpush1.msra.mxu0 0.0
        %1899 = vmatprep.subr.mxu0 0.0
        %1900 = vmatpush1.msra.mxu0 0.0
        %1901 = vmatprep.subr.mxu0 0.0
        %1902 = vmatpush1.msra.mxu0 0.0
        %1903 = vmatprep.mubr.f32.mxu0 0.0
        %1904 = vmatmul.mubr.f32.gmra.mrb[0].mxu0 %v1816
        %v1905 = vpop.f32.mrb[0].mxu0
        %v1906 = vadd.f32 0.0, %v1905
        %v1907 = vpop.f32.mrb[0].mxu0
        %1908 = vmatprep.mubr.f32.mxu0 0.0
        %1909 = vmatmul.mubr.f32.gmra.mrb[0].mxu0 %v1819
        %v1910 = vpop.f32.mrb[0].mxu0
        %v1911 = vadd.f32 0.0, %v1910
        %v1912 = vpop.f32.mrb[0].mxu0
        %1913 = vmatprep.mubr.f32.mxu0 0.0
        %1914 = vmatmul.mubr.f32.gmra.mrb[0].mxu0 %v1822
        %v1915 = vpop.f32.mrb[0].mxu0
        %v1916 = vadd.f32 0.0, %v1915
        %v1917 = vpop.f32.mrb[0].mxu0
        %1918 = vmatprep.mubr.f32.mxu0 0.0
        %1919 = vmatmul.mubr.f32.gmra.mrb[0].mxu0 %v1825
        %v1920 = vpop.f32.mrb[0].mxu0
        %v1921 = vadd.f32 0.0, %v1920
        %v1922 = vpop.f32.mrb[0].mxu0
        %1923 = vmatprep.mubr.f32.mxu0 0.0
        %1924 = vmatmul.mubr.f32.gmra.mrb[0].mxu0 %v1828
        %v1925 = vpop.f32.mrb[0].mxu0
        %v1926 = vadd.f32 0.0, %v1925
        %v1927 = vpop.f32.mrb[0].mxu0
        %1928 = vmatprep.mubr.f32.mxu0 0.0
        %1929 = vmatmul.mubr.f32.gmra.mrb[0].mxu0 %v1831
        %v1930 = vpop.f32.mrb[0].mxu0
        %v1931 = vadd.f32 0.0, %v1930
        %v1932 = vpop.f32.mrb[0].mxu0
        %1933 = vmatprep.mubr.f32.mxu0 0.0
        %1934 = vmatmul.mubr.f32.gmra.mrb[0].mxu0 %v1834
        %v1935 = vpop.f32.mrb[0].mxu0
        %v1936 = vadd.f32 0.0, %v1935
        %v1937 = vpop.f32.mrb[0].mxu0
        %1938 = vmatprep.mubr.f32.mxu0 0.0
        %1939 = vmatmul.mubr.f32.gmra.mrb[0].mxu0 %v1837
        %v1940 = vpop.f32.mrb[0].mxu0
        %v1941 = vadd.f32 0.0, %v1940
        %v1942 = vpop.f32.mrb[0].mxu0
        %1943 = vdwg.mxu0
        %v1945 = vsel %vm1160, %v1814, 0
        %1947 = vmatprep.subr.mxu0 0.0
        %1948 = vmatpush1.msra.mxu0 %v1277
        %1949 = vmatprep.subr.mxu0 0.0
        %1950 = vmatpush1.msra.mxu0 0.0
        %1951 = vmatprep.subr.mxu0 0.0
        %1952 = vmatpush1.msra.mxu0 0.0
        %1953 = vmatprep.subr.mxu0 0.0
        %1954 = vmatpush1.msra.mxu0 0.0
        %1955 = vmatprep.subr.mxu0 0.0
        %1956 = vmatpush1.msra.mxu0 0.0
        %1957 = vmatprep.subr.mxu0 0.0
        %1958 = vmatpush1.msra.mxu0 0.0
        %1959 = vmatprep.subr.mxu0 0.0
        %1960 = vmatpush1.msra.mxu0 0.0
        %1961 = vmatprep.subr.mxu0 0.0
        %1962 = vmatpush1.msra.mxu0 0.0
        %1963 = vmatprep.subr.mxu0 0.0
        %1964 = vmatpush1.msra.mxu0 0.0
        %1965 = vmatprep.subr.mxu0 0.0
        %1966 = vmatpush1.msra.mxu0 0.0
        %1967 = vmatprep.subr.mxu0 0.0
        %1968 = vmatpush1.msra.mxu0 0.0
        %1969 = vmatprep.subr.mxu0 0.0
        %1970 = vmatpush1.msra.mxu0 0.0
        %1971 = vmatprep.subr.mxu0 0.0
        %1972 = vmatpush1.msra.mxu0 0.0
        %1973 = vmatprep.subr.mxu0 0.0
        %1974 = vmatpush1.msra.mxu0 0.0
        %1975 = vmatprep.subr.mxu0 0.0
        %1976 = vmatpush1.msra.mxu0 0.0
        %1977 = vmatprep.subr.mxu0 0.0
        %1978 = vmatpush1.msra.mxu0 0.0
        %1979 = vmatprep.subr.mxu0 0.0
        %1980 = vmatpush1.msra.mxu0 0.0
        %1981 = vmatprep.subr.mxu0 0.0
        %1982 = vmatpush1.msra.mxu0 0.0
        %1983 = vmatprep.subr.mxu0 0.0
        %1984 = vmatpush1.msra.mxu0 0.0
        %1985 = vmatprep.subr.mxu0 0.0
        %1986 = vmatpush1.msra.mxu0 0.0
        %1987 = vmatprep.subr.mxu0 0.0
        %1988 = vmatpush1.msra.mxu0 0.0
        %1989 = vmatprep.subr.mxu0 0.0
        %1990 = vmatpush1.msra.mxu0 0.0
        %1991 = vmatprep.subr.mxu0 0.0
        %1992 = vmatpush1.msra.mxu0 0.0
        %1993 = vmatprep.subr.mxu0 0.0
        %1994 = vmatpush1.msra.mxu0 0.0
        %1995 = vmatprep.subr.mxu0 0.0
        %1996 = vmatpush1.msra.mxu0 0.0
        %1997 = vmatprep.subr.mxu0 0.0
        %1998 = vmatpush1.msra.mxu0 0.0
        %1999 = vmatprep.subr.mxu0 0.0
        %2000 = vmatpush1.msra.mxu0 0.0
        %2001 = vmatprep.subr.mxu0 0.0
        %2002 = vmatpush1.msra.mxu0 0.0
        %2003 = vmatprep.subr.mxu0 0.0
        %2004 = vmatpush1.msra.mxu0 0.0
        %2005 = vmatprep.subr.mxu0 0.0
        %2006 = vmatpush1.msra.mxu0 0.0
        %2007 = vmatprep.subr.mxu0 0.0
        %2008 = vmatpush1.msra.mxu0 0.0
        %2009 = vmatprep.subr.mxu0 0.0
        %2010 = vmatpush1.msra.mxu0 0.0
        %2011 = vmatprep.mubr.f32.mxu0 0.0
        %2012 = vmatmul.mubr.f32.gmra.mrb[0].mxu0 %v1945
        %v2013 = vpop.f32.mrb[0].mxu0
        %v2014 = vadd.f32 0.0, %v2013
        %v2015 = vpop.f32.mrb[0].mxu0
        %2016 = vdwg.mxu0
        %v2017 = vmul.f32 %v1906, %v759
        %v2018 = vmul.f32 %v1911, %v764
        %v2019 = vmul.f32 %v1916, %v769
        %v2020 = vmul.f32 %v1921, %v774
        %v2021 = vmul.f32 %v1926, %v779
        %v2022 = vmul.f32 %v1931, %v784
        %v2023 = vmul.f32 %v1936, %v789
        %v2024 = vmul.f32 %v1941, %v794
        %v2025 = vadd.f32 %v2017, %v2018
        %v2026 = vadd.f32 %v2025, %v2019
        %v2027 = vadd.f32 %v2026, %v2020
        %v2028 = vadd.f32 %v2027, %v2021
        %v2029 = vadd.f32 %v2028, %v2022
        %v2030 = vadd.f32 %v2029, %v2023
        %v2031 = vadd.f32 %v2030, %v2024
        %v2032 = vrot.slane %v2031, 4
        %v2033 = vadd.f32 %v2031, %v2032
        %v2034 = vrot.slane %v2033, 2
        %v2035 = vadd.f32 %v2033, %v2034
        %v2036 = vrot.slane %v2035, 1
        %v2037 = vadd.f32 %v2035, %v2036
        %v2039 = vrot.slane %v867, 1
        %v2041 = vmul.f32 %v2014, %v2039
        %v2042 = vadd.f32 %v2037, %v2041
        %2043 = vxpose.xlu0.b32.start [1/16] %v1806, 128
        %2044 = vxpose.xlu0.b32.cont [2/16] %v1807, 128
        %2045 = vxpose.xlu0.b32.cont [3/16] %v1808, 128
        %2046 = vxpose.xlu0.b32.cont [4/16] %v1809, 128
        %2047 = vxpose.xlu0.b32.cont [5/16] %v1810, 128
        %2048 = vxpose.xlu0.b32.cont [6/16] %v1811, 128
        %2049 = vxpose.xlu0.b32.cont [7/16] %v1812, 128
        %2050 = vxpose.xlu0.b32.cont [8/16] %v1813, 128
        %2051 = vxpose.xlu0.b32.cont [9/16] 0.0, 128
        %2052 = vxpose.xlu0.b32.cont [10/16] 0.0, 128
        %2053 = vxpose.xlu0.b32.cont [11/16] 0.0, 128
        %2054 = vxpose.xlu0.b32.cont [12/16] 0.0, 128
        %2055 = vxpose.xlu0.b32.cont [13/16] 0.0, 128
        %2056 = vxpose.xlu0.b32.cont [14/16] 0.0, 128
        %2057 = vxpose.xlu0.b32.cont [15/16] 0.0, 128
        %2058 = vxpose.xlu0.b32.end [16/16] 0.0, 128
        %v2059 = vpop.trf.xlu0
        %v2060 = vpop.trf.xlu0
        %v2061 = vpop.trf.xlu0
        %v2062 = vpop.trf.xlu0
        %v2063 = vpop.trf.xlu0
        %v2064 = vpop.trf.xlu0
        %v2065 = vpop.trf.xlu0
        %v2066 = vpop.trf.xlu0
        %v2067 = vpop.trf.xlu0
        %v2068 = vpop.trf.xlu0
        %v2069 = vpop.trf.xlu0
        %v2070 = vpop.trf.xlu0
        %v2071 = vpop.trf.xlu0
        %v2072 = vpop.trf.xlu0
        %v2073 = vpop.trf.xlu0
        %v2074 = vpop.trf.xlu0
        %v2075 = vsel %vm1512, %v2059, 0.0
        %v2076 = vrot.slane %v2075, 4
        %v2077 = vadd.f32 %v2075, %v2076
        %v2078 = vrot.slane %v2077, 2
        %v2079 = vadd.f32 %v2077, %v2078
        %v2080 = vrot.slane %v2079, 1
        %v2081 = vadd.f32 %v2079, %v2080
        %v2082 = vmul.f32 %v2081, %v1520
        %v2083 = vsel %vm1522, %v1814, 0.0
        %2084 = vadd.xlane.f32.xlu0 %v2083
        %v2085 = vpop.xlane.xlu0 %2084
        %v2086 = vmul.f32 %v2085, %v1520
        %2088 = vrot.lane.b32.xlu0 %v2082, 1
        %v2089 = vpop.permute.xlu0 %2088
        %v2091 = vsel %vm1531, %v2086, %v2089
        %s2092 = scalar_lea.vmem %s420, 1 [#allocation4]
        %2093 = vst.msk [vmem:[%s2092] sm:$0x1] %vm1533, %v2091
        %v2095 = vrot.slane %v2042, 7
        %v2097 = vsel %vm587, %v1479, %v2095
        %v2098 = vld [vmem:[%s9] sm:$0xff]
        %v2099 = vld [vmem:[%s9 + $0x8] sm:$0xff]
        %v2100 = vld [vmem:[%s9 + $0x10] sm:$0xff]
        %v2101 = vld [vmem:[%s9 + $0x18] sm:$0xff]
        %v2102 = vld [vmem:[%s9 + $0x20] sm:$0xff]
        %v2103 = vld [vmem:[%s9 + $0x28] sm:$0xff]
        %v2104 = vld [vmem:[%s9 + $0x30] sm:$0xff]
        %v2105 = vld [vmem:[%s9 + $0x38] sm:$0xff]
        %v2106 = vld [vmem:[%s9 + $0x40] sm:$0xff]
        %v2107 = vld [vmem:[%s9 + $0x48] sm:$0xff]
        %v2108 = vld [vmem:[%s9 + $0x50] sm:$0xff]
        %v2109 = vld [vmem:[%s9 + $0x58] sm:$0xff]
        %v2110 = vld [vmem:[%s9 + $0x60] sm:$0xff]
        %v2111 = vld [vmem:[%s9 + $0x68] sm:$0xff]
        %v2112 = vld [vmem:[%s9 + $0x70] sm:$0xff]
        %v2113 = vld [vmem:[%s9 + $0x78] sm:$0xff]
        %v2114 = vld [vmem:[%s10] sm:$0x1]
        %v2116 = vlaneseq
        %v2117 = vshrl.u32 %v2116, 7
        %v2118 = vsub.s32 0, %v2117
        %v2119 = vrot.slane %v2114, %v2118
        %2121 = vmatprep.subr.mxu0 0.0
        %2122 = vmatpush1.msra.mxu0 %v2098
        %2123 = vmatprep.subr.mxu0 0.0
        %2124 = vmatpush1.msra.mxu0 %v2099
        %2125 = vmatprep.subr.mxu0 0.0
        %2126 = vmatpush1.msra.mxu0 %v2100
        %2127 = vmatprep.subr.mxu0 0.0
        %2128 = vmatpush1.msra.mxu0 %v2101
        %2129 = vmatprep.subr.mxu0 0.0
        %2130 = vmatpush1.msra.mxu0 %v2102
        %2131 = vmatprep.subr.mxu0 0.0
        %2132 = vmatpush1.msra.mxu0 %v2103
        %2133 = vmatprep.subr.mxu0 0.0
        %2134 = vmatpush1.msra.mxu0 %v2104
        %2135 = vmatprep.subr.mxu0 0.0
        %2136 = vmatpush1.msra.mxu0 %v2105
        %2137 = vmatprep.subr.mxu0 0.0
        %2138 = vmatpush1.msra.mxu0 %v2106
        %2139 = vmatprep.subr.mxu0 0.0
        %2140 = vmatpush1.msra.mxu0 %v2107
        %2141 = vmatprep.subr.mxu0 0.0
        %2142 = vmatpush1.msra.mxu0 %v2108
        %2143 = vmatprep.subr.mxu0 0.0
        %2144 = vmatpush1.msra.mxu0 %v2109
        %2145 = vmatprep.subr.mxu0 0.0
        %2146 = vmatpush1.msra.mxu0 %v2110
        %2147 = vmatprep.subr.mxu0 0.0
        %2148 = vmatpush1.msra.mxu0 %v2111
        %2149 = vmatprep.subr.mxu0 0.0
        %2150 = vmatpush1.msra.mxu0 %v2112
        %2151 = vmatprep.subr.mxu0 0.0
        %2152 = vmatpush1.msra.mxu0 %v2113
        %2153 = vmatprep.subr.mxu0 0.0
        %2154 = vmatpush1.msra.mxu0 0.0
        %2155 = vmatprep.subr.mxu0 0.0
        %2156 = vmatpush1.msra.mxu0 0.0
        %2157 = vmatprep.subr.mxu0 0.0
        %2158 = vmatpush1.msra.mxu0 0.0
        %2159 = vmatprep.subr.mxu0 0.0
        %2160 = vmatpush1.msra.mxu0 0.0
        %2161 = vmatprep.subr.mxu0 0.0
        %2162 = vmatpush1.msra.mxu0 0.0
        %2163 = vmatprep.subr.mxu0 0.0
        %2164 = vmatpush1.msra.mxu0 0.0
        %2165 = vmatprep.subr.mxu0 0.0
        %2166 = vmatpush1.msra.mxu0 0.0
        %2167 = vmatprep.subr.mxu0 0.0
        %2168 = vmatpush1.msra.mxu0 0.0
        %2169 = vmatprep.subr.mxu0 0.0
        %2170 = vmatpush1.msra.mxu0 0.0
        %2171 = vmatprep.subr.mxu0 0.0
        %2172 = vmatpush1.msra.mxu0 0.0
        %2173 = vmatprep.subr.mxu0 0.0
        %2174 = vmatpush1.msra.mxu0 0.0
        %2175 = vmatprep.subr.mxu0 0.0
        %2176 = vmatpush1.msra.mxu0 0.0
        %2177 = vmatprep.subr.mxu0 0.0
        %2178 = vmatpush1.msra.mxu0 0.0
        %2179 = vmatprep.subr.mxu0 0.0
        %2180 = vmatpush1.msra.mxu0 0.0
        %2181 = vmatprep.subr.mxu0 0.0
        %2182 = vmatpush1.msra.mxu0 0.0
        %2183 = vmatprep.subr.mxu0 0.0
        %2184 = vmatpush1.msra.mxu0 0.0
        %2185 = vmatprep.mubr.f32.mxu0 0.0
        %2186 = vmatmul.mubr.f32.gmra.mrb[0].mxu0 %v2097
        %v2187 = vpop.f32.mrb[0].mxu0
        %v2188 = vadd.f32 %v2119, %v2187
        %v2189 = vpop.f32.mrb[0].mxu0
        %2190 = vdwg.mxu0
        %v2193 = vunpack.c.l.s4 1966171168
        %v2194 = vunpack.c.0.s8 %v2193
        %v2195 = vlaneseq
        %v2196 = vshrl.u32 %v2195, 7
        %v2197 = vsub.s32 %v2194, %v2196
        %v2198 = vrot.slane %v2188, %v2197
        %v2199 = vcombine.high %v2198, %v2198
        %v2201 = vunpack.c.l.s4 1966171168
        %v2202 = vunpack.c.0.s8 %v2201
        %v2203 = vlaneseq
        %v2204 = vshrl.u32 %v2203, 7
        %v2205 = vsub.s32 %v2202, %v2204
        %v2206 = vrot.slane %v2198, %v2205
        %v2208 = vunpack.c.l.s4 1966171168
        %v2209 = vunpack.c.0.s8 %v2208
        %v2210 = vlaneseq
        %v2211 = vshrl.u32 %v2210, 7
        %v2212 = vsub.s32 %v2209, %v2211
        %v2213 = vrot.slane %v2199, %v2212
        %2216 = vst [vmem:[%s413] sm:$0x1] %v2206
        %2217 = vst [vmem:[%s413 + $0x1] sm:$0x1] %v2213
        %s2218 = sand.u32 %s274, 1
        %s2219 = scalar_lea.sflag [#allocation3], %s2218
        %s2220 = sand.u32 %s274, 1
        %s2221 = smul.addr %s2220, 2
        %s2222 = scalar_lea.vmem [#allocation2], %s2221
        %s2223 = sand.u32 %s300, 1
        %s2224 = scalar_lea.sflag [#allocation5], %s2223
        %s2225 = sand.u32 %s300, 1
        %s2226 = smul.addr %s2225, 2
        %s2227 = scalar_lea.vmem [#allocation4], %s2226
        // Predicated region
        $region65: #{attention_pool2d.1} parent=63 // pred_check
          %p2228 = pneg %p284
        $region66: #{attention_pool2d.1} parent=63 // pred_check_branch
          %2230 = sbr.rel (%p2228) target = $region68
        $region67: #{attention_pool2d.1} parent=63 // pred_region
          %s2231 = smul.u32 2, %s30
          %s2233 = ssub.s32 32, 32
          %2234 = vsyncadd %s2219, %s2233
          %s2235 = smul.addr %s2231, 16
          %s2236 = scalar_lea.hbm %s11, %s2235
          %s2237 = sshll.u32 %s2222, 4
          %s2238 = int_to_ptr.vmem [resolvable:$true] %s2237
          %2243 = dma.vmem_to_hbm [thread:$0]  %s2238, 32, %s2236, %s2219, 16, 16, 1
        $region68: #{attention_pool2d.1} parent=63 // pred_fallthru
          _
        // Predicated region
        $region69: #{attention_pool2d.1} parent=63 // pred_check
          %p2244 = pneg %p310
        $region70: #{attention_pool2d.1} parent=63 // pred_check_branch
          %2246 = sbr.rel (%p2244) target = $region72
        $region71: #{attention_pool2d.1} parent=63 // pred_region
          %s2247 = smul.u32 2, %s30
          %s2249 = ssub.s32 32, 32
          %2250 = vsyncadd %s2224, %s2249
          %s2251 = smul.addr %s2247, 16
          %s2252 = scalar_lea.hbm %s12, %s2251
          %s2253 = sshll.u32 %s2227, 4
          %s2254 = int_to_ptr.vmem [resolvable:$true] %s2253
          %2259 = dma.vmem_to_hbm [thread:$0]  %s2254, 32, %s2252, %s2224, 16, 16, 1
        $region72: #{attention_pool2d.1} parent=63 // pred_fallthru
          _
      $region64: #{attention_pool2d.1} parent=5 // pred_fallthru
        _
      %p2260 = scmp.le.s32.totalorder 2, %s25
      // Predicated region
      $region73: #{attention_pool2d.1} parent=5 // pred_check
        %p2261 = pneg %p2260
      $region74: #{attention_pool2d.1} parent=5 // pred_check_branch
        %2263 = sbr.rel (%p2261) target = $region76
      $region75: #{attention_pool2d.1} parent=5 // pred_region
        %s2264 = ssub.s32 %s25, 2
        // Predicated region
        $region77: #{attention_pool2d.1} parent=75 // pred_check
          %p2265 = pneg %p290
        $region78: #{attention_pool2d.1} parent=75 // pred_check_branch
          %2267 = sbr.rel (%p2265) target = $region80
        $region79: #{attention_pool2d.1} parent=75 // pred_region
          %s2268 = sand.u32 %s275, 1
          %s2269 = scalar_lea.sflag [#allocation3], %s2268
          %s2270 = sand.u32 %s275, 1
          %s2271 = smul.addr %s2270, 2
          %s2272 = scalar_lea.vmem [#allocation2], %s2271
          %2273 = dma.done %s2269, 32
        $region80: #{attention_pool2d.1} parent=75 // pred_fallthru
          _
        // Predicated region
        $region81: #{attention_pool2d.1} parent=75 // pred_check
          %p2274 = pneg %p316
        $region82: #{attention_pool2d.1} parent=75 // pred_check_branch
          %2276 = sbr.rel (%p2274) target = $region84
        $region83: #{attention_pool2d.1} parent=75 // pred_region
          %s2277 = sand.u32 %s301, 1
          %s2278 = scalar_lea.sflag [#allocation5], %s2277
          %s2279 = sand.u32 %s301, 1
          %s2280 = smul.addr %s2279, 2
          %s2281 = scalar_lea.vmem [#allocation4], %s2280
          %2282 = dma.done %s2278, 32
        $region84: #{attention_pool2d.1} parent=75 // pred_fallthru
          _
      $region76: #{attention_pool2d.1} parent=5 // pred_fallthru
        _
    $region6: #{attention_pool2d.1} parent=1 // loop_footer
      %s29 = sadd.s32 1, %s25
    $region7: #{attention_pool2d.1} parent=1 // loop_footer_branch
      %24 = sbr.rel target = $region3
    $region8: #{attention_pool2d.1} parent=1 // loop_exit
      _
    %2283 = vsyncpa [#allocation3], 1
    %s2284 = scalar_lea.sflag [#allocation3], 1
    %2285 = vsyncpa %s2284, 1
    %2286 = vsyncpa [#allocation5], 1
    %s2287 = scalar_lea.sflag [#allocation5], 1
    %2288 = vsyncpa %s2287, 1

</llo_original>
